<compile_context>
chip_gen: v5e
topology: v5e:2x2
jax: 0.10.0
libtpu: 0.0.40
codegen_flags: <defaults>
</compile_context>

<pallas_src>
import math

import jax
import jax.numpy as jnp
from jax import lax
from jax.experimental import pallas as pl
from jax.experimental.pallas import tpu as pltpu


def _round_up(x, m):
    return ((x + m - 1) // m) * m


# --------------------------- Linear projection kernel ---------------------------

def _linear_kernel(x_ref, w_ref, b_ref, o_ref, acc_ref):
    # x: (tm, tk) bf16, w: (tn, tk) bf16, b: (1, tn) f32, acc: (tm, tn) f32
    @pl.when(pl.program_id(2) == 0)
    def _():
        acc_ref[...] = jnp.zeros_like(acc_ref)

    acc_ref[...] += lax.dot_general(
        x_ref[...], w_ref[...],
        (((1,), (1,)), ((), ())),                 # contract last dims, no transpose
        preferred_element_type=jnp.float32)

    @pl.when(pl.program_id(2) == pl.num_programs(2) - 1)
    def _():
        o_ref[...] = (acc_ref[...] + b_ref[...]).astype(o_ref.dtype)


def pallas_linear(x, w, b, *, compute_dtype=jnp.bfloat16, out_dtype=jnp.float32,
                  tm=512, tn=256, tk=512, vmem_limit=48 * 1024 * 1024):
    """y = x @ w.T + b with x: (T, d_in), w: (d_out, d_in), b: (d_out,)."""
    T, d_in = x.shape
    d_out = w.shape[0]

    # Block sizes: full dim when small ("equals array dim" exemption from the
    # (8,128) rule), otherwise aligned targets; pad so blocks divide evenly.
    bm = T if T <= tm else tm
    bn = d_out if d_out <= tn else tn
    bk = d_in if d_in <= tk else tk
    Tp, Np, Kp = _round_up(T, bm), _round_up(d_out, bn), _round_up(d_in, bk)

    xp = x.astype(compute_dtype)
    if (Tp, Kp) != (T, d_in):
        xp = jnp.pad(xp, ((0, Tp - T), (0, Kp - d_in)))
    wp = w.astype(compute_dtype)
    if (Np, Kp) != (d_out, d_in):
        wp = jnp.pad(wp, ((0, Np - d_out), (0, Kp - d_in)))
    bp = b.astype(jnp.float32)
    if Np != d_out:
        bp = jnp.pad(bp, (0, Np - d_out))
    bp = bp.reshape(1, Np)

    grid = (Tp // bm, Np // bn, Kp // bk)
    y = pl.pallas_call(
        _linear_kernel,
        out_shape=jax.ShapeDtypeStruct((Tp, Np), out_dtype),
        grid_spec=pltpu.PrefetchScalarGridSpec(
            num_scalar_prefetch=0,
            grid=grid,
            in_specs=[
                pl.BlockSpec((bm, bk), lambda i, j, kk: (i, kk)),
                pl.BlockSpec((bn, bk), lambda i, j, kk: (j, kk)),
                pl.BlockSpec((1, bn), lambda i, j, kk: (0, j)),
            ],
            out_specs=pl.BlockSpec((bm, bn), lambda i, j, kk: (i, j)),
            scratch_shapes=[pltpu.VMEM((bm, bn), jnp.float32)],
        ),
        compiler_params=pltpu.CompilerParams(
            dimension_semantics=("parallel", "parallel", "arbitrary"),
            vmem_limit_bytes=vmem_limit,
        ),
    )(xp, wp, bp)

    if (Tp, Np) != (T, d_out):
        y = y[:T, :d_out]
    return y


# ------------------------------ Attention core kernel ------------------------------

def _make_attn_kernel(scale, h, d_k, d_v):
    def attn_kernel(q_ref, k_ref, v_ref, o_ref, att_ref):
        # q_ref: (tq, h, d_k)  k_ref: (nk, h, d_k)  v_ref: (nk, h, d_v)   [bf16]
        # o_ref: (tq, h*d_v) [bf16]   att_ref: (h, tq, nk) [f32]
        q = q_ref[...]
        k = k_ref[...]
        v = v_ref[...]
        for head in range(h):                       # static unroll over heads
            q_h = q[:, head, :]                     # (tq, d_k)
            k_h = k[:, head, :]                     # (nk, d_k)
            v_h = v[:, head, :]                     # (nk, d_v)
            # scores: contract last dims -> no explicit transpose of k
            att = lax.dot_general(
                q_h, k_h, (((1,), (1,)), ((), ())),
                preferred_element_type=jnp.float32) * scale
            att_ref[head] = att                     # pre-softmax att_map (f32)
            # numerically stable softmax in f32; reciprocal on the EUP
            m = jnp.max(att, axis=-1, keepdims=True)
            e = jnp.exp(att - m)
            p = e * pl.reciprocal(jnp.sum(e, axis=-1, keepdims=True), approx=True)
            o_h = lax.dot_general(
                p.astype(v_h.dtype), v_h, (((1,), (0,)), ((), ())),
                preferred_element_type=jnp.float32)  # (tq, d_v)
            o_ref[:, head * d_v:(head + 1) * d_v] = o_h.astype(o_ref.dtype)
    return attn_kernel


def pallas_attention_core(q, k, v, d_k, *, tq_target=256,
                          vmem_limit=48 * 1024 * 1024):
    """q: (b, nq, h, d_k), k: (b, nk, h, d_k), v: (b, nk, h, d_v)
       returns out: (b, nq, h*d_v) (q.dtype), att_map: (b, h, nq, nk) (f32)."""
    b_s, nq, h, dk = q.shape
    nk = k.shape[1]
    d_v = v.shape[3]
    scale = 1.0 / math.sqrt(d_k)

    tq = nq if nq <= tq_target else tq_target
    nq_p = _round_up(nq, tq)
    if nq_p != nq:
        q = jnp.pad(q, ((0, 0), (0, nq_p - nq), (0, 0), (0, 0)))

    grid = (b_s, nq_p // tq)
    out, att = pl.pallas_call(
        _make_attn_kernel(scale, h, d_k, d_v),
        out_shape=(
            jax.ShapeDtypeStruct((b_s, nq_p, h * d_v), q.dtype),
            jax.ShapeDtypeStruct((b_s, h, nq_p, nk), jnp.float32),
        ),
        grid_spec=pltpu.PrefetchScalarGridSpec(
            num_scalar_prefetch=0,
            grid=grid,
            in_specs=[
                pl.BlockSpec((pl.Squeezed(), tq, h, dk), lambda b, qi: (b, qi, 0, 0)),
                pl.BlockSpec((pl.Squeezed(), nk, h, dk), lambda b, qi: (b, 0, 0, 0)),
                pl.BlockSpec((pl.Squeezed(), nk, h, d_v), lambda b, qi: (b, 0, 0, 0)),
            ],
            out_specs=[
                pl.BlockSpec((pl.Squeezed(), tq, h * d_v), lambda b, qi: (b, qi, 0)),
                pl.BlockSpec((pl.Squeezed(), h, tq, nk), lambda b, qi: (b, 0, qi, 0)),
            ],
        ),
        compiler_params=pltpu.CompilerParams(
            dimension_semantics=("parallel", "parallel"),
            vmem_limit_bytes=vmem_limit,
        ),
    )(q, k, v)

    if nq_p != nq:
        out = out[:, :nq]
        att = att[:, :, :nq]
    return out, att


# --------------------------- Module (params + forward) ---------------------------

def xavier_uniform(key, shape):
    fan_out, fan_in = shape
    bound = math.sqrt(6.0 / (fan_in + fan_out))
    return jax.random.uniform(key, shape, jnp.float32, -bound, bound)


def init_params(key, d_model, d_k, d_v, h):
    ks = jax.random.split(key, 4)
    return {
        "w_q": xavier_uniform(ks[0], (h * d_k, d_model)),
        "b_q": jnp.zeros((h * d_k,), jnp.float32),
        "w_k": xavier_uniform(ks[1], (h * d_k, d_model)),
        "b_k": jnp.zeros((h * d_k,), jnp.float32),
        "w_v": xavier_uniform(ks[2], (h * d_v, d_model)),
        "b_v": jnp.zeros((h * d_v,), jnp.float32),
        "w_o": xavier_uniform(ks[3], (d_model, h * d_v)),
        "b_o": jnp.zeros((d_model,), jnp.float32),
    }


def scaled_dot_product_attention(params, queries, keys, values, d_k, d_v, h,
                                 compute_dtype=jnp.bfloat16):
    b_s, nq, d_model = queries.shape
    nk = keys.shape[1]

    # Projections (tiled, pipelined Pallas matmuls; bf16 operands, f32 accumulate).
    q = pallas_linear(queries.reshape(b_s * nq, d_model), params["w_q"], params["b_q"],
                      compute_dtype=compute_dtype, out_dtype=compute_dtype)
    k = pallas_linear(keys.reshape(b_s * nk, d_model), params["w_k"], params["b_k"],
                      compute_dtype=compute_dtype, out_dtype=compute_dtype)
    v = pallas_linear(values.reshape(b_s * nk, d_model), params["w_v"], params["b_v"],
                      compute_dtype=compute_dtype, out_dtype=compute_dtype)

    # Contiguous (free) reshapes -- no XLA transposes between kernels.
    q = q.reshape(b_s, nq, h, d_k)
    k = k.reshape(b_s, nk, h, d_k)
    v = v.reshape(b_s, nk, h, d_v)

    # Attention core: one grid step per (batch, q-tile), all heads per step.
    out_core, att_map = pallas_attention_core(q, k, v, d_k)

    # Output projection consumes (b*nq, h*d_v) directly (again a free reshape).
    out = pallas_linear(out_core.reshape(b_s * nq, h * d_v), params["w_o"], params["b_o"],
                        compute_dtype=compute_dtype, out_dtype=jnp.float32)
    return out.reshape(b_s, nq, d_model), att_map


# --------------------------------- Reference (f32) ---------------------------------

def reference_attention(params, queries, keys, values, d_k, d_v, h):
    b_s, nq, d_model = queries.shape
    nk = keys.shape[1]
    q = queries @ params["w_q"].T + params["b_q"]
    k = keys @ params["w_k"].T + params["b_k"]
    v = values @ params["w_v"].T + params["b_v"]
    q = q.reshape(b_s, nq, h, d_k).transpose(0, 2, 1, 3)
    k = k.reshape(b_s, nk, h, d_k).transpose(0, 2, 3, 1)
    v = v.reshape(b_s, nk, h, d_v).transpose(0, 2, 1, 3)
    att = (q @ k) / math.sqrt(d_k)
    att_map = att
    p = jax.nn.softmax(att, axis=-1)
    out = (p @ v).transpose(0, 2, 1, 3).reshape(b_s, nq, h * d_v)
    out = out @ params["w_o"].T + params["b_o"]
    return out, att_map


# ----------------------------------- Main ------------------------------------

if __name__ == "__main__":
    d_model, d_k, d_v, h = 32, 16, 16, 4
    b_s, nq, nk = 2, 8, 8

    key = jax.random.PRNGKey(0)
    kp, kq, kk, kv = jax.random.split(key, 4)

    params = init_params(kp, d_model, d_k, d_v, h)
    queries = jax.random.normal(kq, (b_s, nq, d_model), jnp.float32)
    keys = jax.random.normal(kk, (b_s, nk, d_model), jnp.float32)
    values = jax.random.normal(kv, (b_s, nk, d_model), jnp.float32)

    fwd = jax.jit(lambda p, q_, k_, v_:
                  scaled_dot_product_attention(p, q_, k_, v_, d_k, d_v, h))
    out, att_map = fwd(params, queries, keys, values)
    out = jax.block_until_ready(out)
    att_map = jax.block_until_ready(att_map)

    ref_out, ref_att = reference_attention(params, queries, keys, values, d_k, d_v, h)
    assert out.shape == (b_s, nq, d_model)
    assert att_map.shape == (b_s, h, nq, nk)
    # bf16 matmul operands + approximate reciprocal => loosened tolerance vs f32 ref.
    assert jnp.allclose(out, ref_out, atol=5e-2, rtol=5e-2)
    assert jnp.allclose(att_map, ref_att, atol=5e-2, rtol=5e-2)

    print("KERNEL_OK")
</pallas_src>

<mosaic_0001>
module attributes {stable_mosaic.version = 11 : i64} {
  func.func @_linear_kernel(%arg0: i32, %arg1: i32, %arg2: i32, %arg3: memref<16x32xbf16, #tpu.memory_space<vmem>>, %arg4: memref<64x32xbf16, #tpu.memory_space<vmem>>, %arg5: memref<1x64xf32, #tpu.memory_space<vmem>>, %arg6: memref<16x64xbf16, #tpu.memory_space<vmem>>, %arg7: memref<16x64xf32, #tpu.memory_space<vmem>>) attributes {dimension_semantics = [#tpu.dimension_semantics<parallel>, #tpu.dimension_semantics<parallel>, #tpu.dimension_semantics<arbitrary>], iteration_bounds = array<i64: 1, 1, 1>, scalar_prefetch = 0 : i64, scratch_operands = 1 : i64, tpu.core_type = #tpu.core_type<tc>, window_params = [{transform_indices = @transform_0, window_bounds = array<i64: 16, 32>}, {transform_indices = @transform_1, window_bounds = array<i64: 64, 32>}, {transform_indices = @transform_2, window_bounds = array<i64: 1, 64>}, {transform_indices = @transform_3, window_bounds = array<i64: 16, 64>}]} {
    %c0_i32 = arith.constant 0 : i32
    %0 = arith.cmpi eq, %arg2, %c0_i32 : i32
    %1 = arith.extui %0 : i1 to i32
    %c0_i32_0 = arith.constant 0 : i32
    %2 = arith.cmpi ne, %1, %c0_i32_0 : i32
    scf.if %2 {
      %cst_10 = arith.constant 0.000000e+00 : f32
      %12 = vector.broadcast %cst_10 : f32 to vector<16x64xf32>
      %c0_11 = arith.constant 0 : index
      %c0_12 = arith.constant 0 : index
      %13 = vector.load %arg7[%c0_11, %c0_12] : memref<16x64xf32, #tpu.memory_space<vmem>>, vector<16x64xf32>
      tpu.vector_store %arg7[%c0_11, %c0_12], %12 {strides = array<i32>} : memref<16x64xf32, #tpu.memory_space<vmem>>, vector<16x64xf32>,
    } else {
    }
    %c0 = arith.constant 0 : index
    %c0_1 = arith.constant 0 : index
    %3 = vector.load %arg7[%c0, %c0_1] : memref<16x64xf32, #tpu.memory_space<vmem>>, vector<16x64xf32>
    %c0_2 = arith.constant 0 : index
    %c0_3 = arith.constant 0 : index
    %4 = vector.load %arg3[%c0_2, %c0_3] : memref<16x32xbf16, #tpu.memory_space<vmem>>, vector<16x32xbf16>
    %c0_4 = arith.constant 0 : index
    %c0_5 = arith.constant 0 : index
    %5 = vector.load %arg4[%c0_4, %c0_5] : memref<64x32xbf16, #tpu.memory_space<vmem>>, vector<64x32xbf16>
    %cst = arith.constant dense<0.000000e+00> : vector<16x64xf32>
    %6 = tpu.matmul %4, %5, %cst {dimension_numbers = #tpu.dot_dimension_numbers<[1], [1], [0], [0], [0, 0, 1, 0], [], []>} : vector<16x32xbf16>, vector<64x32xbf16>, vector<16x64xf32> -> vector<16x64xf32>
    %7 = arith.addf %3, %6 : vector<16x64xf32>
    %c0_6 = arith.constant 0 : index
    %c0_7 = arith.constant 0 : index
    %8 = vector.load %arg7[%c0_6, %c0_7] : memref<16x64xf32, #tpu.memory_space<vmem>>, vector<16x64xf32>
    tpu.vector_store %arg7[%c0_6, %c0_7], %7 {strides = array<i32>} : memref<16x64xf32, #tpu.memory_space<vmem>>, vector<16x64xf32>,
    %c0_i32_8 = arith.constant 0 : i32
    %9 = arith.cmpi eq, %arg2, %c0_i32_8 : i32
    %10 = arith.extui %9 : i1 to i32
    %c0_i32_9 = arith.constant 0 : i32
    %11 = arith.cmpi ne, %10, %c0_i32_9 : i32
    scf.if %11 {
      %c0_10 = arith.constant 0 : index
      %c0_11 = arith.constant 0 : index
      %12 = vector.load %arg7[%c0_10, %c0_11] : memref<16x64xf32, #tpu.memory_space<vmem>>, vector<16x64xf32>
      %c0_12 = arith.constant 0 : index
      %c0_13 = arith.constant 0 : index
      %13 = vector.load %arg5[%c0_12, %c0_13] : memref<1x64xf32, #tpu.memory_space<vmem>>, vector<1x64xf32>
      %14 = vector.broadcast %13 : vector<1x64xf32> to vector<16x64xf32>
      %15 = arith.addf %12, %14 : vector<16x64xf32>
      %16 = arith.truncf %15 : vector<16x64xf32> to vector<16x64xbf16>
      %c0_14 = arith.constant 0 : index
      %c0_15 = arith.constant 0 : index
      %17 = vector.load %arg6[%c0_14, %c0_15] : memref<16x64xbf16, #tpu.memory_space<vmem>>, vector<16x64xbf16>
      tpu.vector_store %arg6[%c0_14, %c0_15], %16 {strides = array<i32>} : memref<16x64xbf16, #tpu.memory_space<vmem>>, vector<16x64xbf16>,
    } else {
    }
    return
  }
  func.func @transform_0(%arg0: i32, %arg1: i32, %arg2: i32) -> (i32, i32) {
    %c0_i32 = arith.constant 0 : i32
    return %arg0, %arg2 : i32, i32
  }
  func.func @transform_1(%arg0: i32, %arg1: i32, %arg2: i32) -> (i32, i32) {
    %c0_i32 = arith.constant 0 : i32
    return %arg1, %arg2 : i32, i32
  }
  func.func @transform_2(%arg0: i32, %arg1: i32, %arg2: i32) -> (i32, i32) {
    %c0_i32 = arith.constant 0 : i32
    %c0_i32_0 = arith.constant 0 : i32
    return %c0_i32, %arg1 : i32, i32
  }
  func.func @transform_3(%arg0: i32, %arg1: i32, %arg2: i32) -> (i32, i32) {
    %c0_i32 = arith.constant 0 : i32
    return %arg0, %arg1 : i32, i32
  }
}

module attributes {stable_mosaic.version = 11 : i64} {
  func.func @_linear_kernel(%arg0: i32, %arg1: i32, %arg2: i32, %arg3: memref<16x64xbf16, #tpu.memory_space<vmem>>, %arg4: memref<32x64xbf16, #tpu.memory_space<vmem>>, %arg5: memref<1x32xf32, #tpu.memory_space<vmem>>, %arg6: memref<16x32xf32, #tpu.memory_space<vmem>>, %arg7: memref<16x32xf32, #tpu.memory_space<vmem>>) attributes {dimension_semantics = [#tpu.dimension_semantics<parallel>, #tpu.dimension_semantics<parallel>, #tpu.dimension_semantics<arbitrary>], iteration_bounds = array<i64: 1, 1, 1>, scalar_prefetch = 0 : i64, scratch_operands = 1 : i64, tpu.core_type = #tpu.core_type<tc>, window_params = [{transform_indices = @transform_0, window_bounds = array<i64: 16, 64>}, {transform_indices = @transform_1, window_bounds = array<i64: 32, 64>}, {transform_indices = @transform_2, window_bounds = array<i64: 1, 32>}, {transform_indices = @transform_3, window_bounds = array<i64: 16, 32>}]} {
    %c0_i32 = arith.constant 0 : i32
    %0 = arith.cmpi eq, %arg2, %c0_i32 : i32
    %1 = arith.extui %0 : i1 to i32
    %c0_i32_0 = arith.constant 0 : i32
    %2 = arith.cmpi ne, %1, %c0_i32_0 : i32
    scf.if %2 {
      %cst_10 = arith.constant 0.000000e+00 : f32
      %12 = vector.broadcast %cst_10 : f32 to vector<16x32xf32>
      %c0_11 = arith.constant 0 : index
      %c0_12 = arith.constant 0 : index
      %13 = vector.load %arg7[%c0_11, %c0_12] : memref<16x32xf32, #tpu.memory_space<vmem>>, vector<16x32xf32>
      tpu.vector_store %arg7[%c0_11, %c0_12], %12 {strides = array<i32>} : memref<16x32xf32, #tpu.memory_space<vmem>>, vector<16x32xf32>,
    } else {
    }
    %c0 = arith.constant 0 : index
    %c0_1 = arith.constant 0 : index
    %3 = vector.load %arg7[%c0, %c0_1] : memref<16x32xf32, #tpu.memory_space<vmem>>, vector<16x32xf32>
    %c0_2 = arith.constant 0 : index
    %c0_3 = arith.constant 0 : index
    %4 = vector.load %arg3[%c0_2, %c0_3] : memref<16x64xbf16, #tpu.memory_space<vmem>>, vector<16x64xbf16>
    %c0_4 = arith.constant 0 : index
    %c0_5 = arith.constant 0 : index
    %5 = vector.load %arg4[%c0_4, %c0_5] : memref<32x64xbf16, #tpu.memory_space<vmem>>, vector<32x64xbf16>
    %cst = arith.constant dense<0.000000e+00> : vector<16x32xf32>
    %6 = tpu.matmul %4, %5, %cst {dimension_numbers = #tpu.dot_dimension_numbers<[1], [1], [0], [0], [0, 0, 1, 0], [], []>} : vector<16x64xbf16>, vector<32x64xbf16>, vector<16x32xf32> -> vector<16x32xf32>
    %7 = arith.addf %3, %6 : vector<16x32xf32>
    %c0_6 = arith.constant 0 : index
    %c0_7 = arith.constant 0 : index
    %8 = vector.load %arg7[%c0_6, %c0_7] : memref<16x32xf32, #tpu.memory_space<vmem>>, vector<16x32xf32>
    tpu.vector_store %arg7[%c0_6, %c0_7], %7 {strides = array<i32>} : memref<16x32xf32, #tpu.memory_space<vmem>>, vector<16x32xf32>,
    %c0_i32_8 = arith.constant 0 : i32
    %9 = arith.cmpi eq, %arg2, %c0_i32_8 : i32
    %10 = arith.extui %9 : i1 to i32
    %c0_i32_9 = arith.constant 0 : i32
    %11 = arith.cmpi ne, %10, %c0_i32_9 : i32
    scf.if %11 {
      %c0_10 = arith.constant 0 : index
      %c0_11 = arith.constant 0 : index
      %12 = vector.load %arg7[%c0_10, %c0_11] : memref<16x32xf32, #tpu.memory_space<vmem>>, vector<16x32xf32>
      %c0_12 = arith.constant 0 : index
      %c0_13 = arith.constant 0 : index
      %13 = vector.load %arg5[%c0_12, %c0_13] : memref<1x32xf32, #tpu.memory_space<vmem>>, vector<1x32xf32>
      %14 = vector.broadcast %13 : vector<1x32xf32> to vector<16x32xf32>
      %15 = arith.addf %12, %14 : vector<16x32xf32>
      %c0_14 = arith.constant 0 : index
      %c0_15 = arith.constant 0 : index
      %16 = vector.load %arg6[%c0_14, %c0_15] : memref<16x32xf32, #tpu.memory_space<vmem>>, vector<16x32xf32>
      tpu.vector_store %arg6[%c0_14, %c0_15], %15 {strides = array<i32>} : memref<16x32xf32, #tpu.memory_space<vmem>>, vector<16x32xf32>,
    } else {
    }
    return
  }
  func.func @transform_0(%arg0: i32, %arg1: i32, %arg2: i32) -> (i32, i32) {
    %c0_i32 = arith.constant 0 : i32
    return %arg0, %arg2 : i32, i32
  }
  func.func @transform_1(%arg0: i32, %arg1: i32, %arg2: i32) -> (i32, i32) {
    %c0_i32 = arith.constant 0 : i32
    return %arg1, %arg2 : i32, i32
  }
  func.func @transform_2(%arg0: i32, %arg1: i32, %arg2: i32) -> (i32, i32) {
    %c0_i32 = arith.constant 0 : i32
    %c0_i32_0 = arith.constant 0 : i32
    return %c0_i32, %arg1 : i32, i32
  }
  func.func @transform_3(%arg0: i32, %arg1: i32, %arg2: i32) -> (i32, i32) {
    %c0_i32 = arith.constant 0 : i32
    return %arg0, %arg1 : i32, i32
  }
}

module attributes {stable_mosaic.version = 11 : i64} {
  func.func @attn_kernel(%arg0: i32, %arg1: i32, %arg2: memref<1x8x4x16xbf16, #tpu.memory_space<vmem>>, %arg3: memref<1x8x4x16xbf16, #tpu.memory_space<vmem>>, %arg4: memref<1x8x4x16xbf16, #tpu.memory_space<vmem>>, %arg5: memref<1x8x64xbf16, #tpu.memory_space<vmem>>, %arg6: memref<1x4x8x8xf32, #tpu.memory_space<vmem>>) attributes {dimension_semantics = [#tpu.dimension_semantics<parallel>, #tpu.dimension_semantics<parallel>], iteration_bounds = array<i64: 2, 1>, scalar_prefetch = 0 : i64, scratch_operands = 0 : i64, tpu.core_type = #tpu.core_type<tc>, window_params = [{transform_indices = @transform_0, window_bounds = array<i64: 1, 8, 4, 16>}, {transform_indices = @transform_1, window_bounds = array<i64: 1, 8, 4, 16>}, {transform_indices = @transform_2, window_bounds = array<i64: 1, 8, 4, 16>}, {transform_indices = @transform_3, window_bounds = array<i64: 1, 8, 64>}, {transform_indices = @transform_4, window_bounds = array<i64: 1, 4, 8, 8>}]} {
    %c0 = arith.constant 0 : index
    %c0_0 = arith.constant 0 : index
    %c0_1 = arith.constant 0 : index
    %c0_2 = arith.constant 0 : index
    %0 = vector.load %arg2[%c0, %c0_0, %c0_1, %c0_2] : memref<1x8x4x16xbf16, #tpu.memory_space<vmem>>, vector<1x8x4x16xbf16>
    %1 = vector.shape_cast %0 : vector<1x8x4x16xbf16> to vector<8x4x16xbf16>
    %c0_3 = arith.constant 0 : index
    %c0_4 = arith.constant 0 : index
    %c0_5 = arith.constant 0 : index
    %c0_6 = arith.constant 0 : index
    %2 = vector.load %arg3[%c0_3, %c0_4, %c0_5, %c0_6] : memref<1x8x4x16xbf16, #tpu.memory_space<vmem>>, vector<1x8x4x16xbf16>
    %3 = vector.shape_cast %2 : vector<1x8x4x16xbf16> to vector<8x4x16xbf16>
    %c0_7 = arith.constant 0 : index
    %c0_8 = arith.constant 0 : index
    %c0_9 = arith.constant 0 : index
    %c0_10 = arith.constant 0 : index
    %4 = vector.load %arg4[%c0_7, %c0_8, %c0_9, %c0_10] : memref<1x8x4x16xbf16, #tpu.memory_space<vmem>>, vector<1x8x4x16xbf16>
    %5 = vector.shape_cast %4 : vector<1x8x4x16xbf16> to vector<8x4x16xbf16>
    %6 = vector.extract_strided_slice %1 {offsets = [0, 0, 0], sizes = [8, 1, 16], strides = [1, 1, 1]} : vector<8x4x16xbf16> to vector<8x1x16xbf16>
    %7 = vector.shape_cast %6 : vector<8x1x16xbf16> to vector<8x16xbf16>
    %8 = vector.extract_strided_slice %3 {offsets = [0, 0, 0], sizes = [8, 1, 16], strides = [1, 1, 1]} : vector<8x4x16xbf16> to vector<8x1x16xbf16>
    %9 = vector.shape_cast %8 : vector<8x1x16xbf16> to vector<8x16xbf16>
    %10 = vector.extract_strided_slice %5 {offsets = [0, 0, 0], sizes = [8, 1, 16], strides = [1, 1, 1]} : vector<8x4x16xbf16> to vector<8x1x16xbf16>
    %11 = vector.shape_cast %10 : vector<8x1x16xbf16> to vector<8x16xbf16>
    %cst = arith.constant dense<0.000000e+00> : vector<8x8xf32>
    %12 = tpu.matmul %7, %9, %cst {dimension_numbers = #tpu.dot_dimension_numbers<[1], [1], [0], [0], [0, 0, 1, 0], [], []>} : vector<8x16xbf16>, vector<8x16xbf16>, vector<8x8xf32> -> vector<8x8xf32>
    %cst_11 = arith.constant 2.500000e-01 : f32
    %13 = vector.broadcast %cst_11 : f32 to vector<8x8xf32>
    %14 = arith.mulf %12, %13 : vector<8x8xf32>
    %c0_12 = arith.constant 0 : index
    %c0_13 = arith.constant 0 : index
    %c0_14 = arith.constant 0 : index
    %c0_15 = arith.constant 0 : index
    %15 = vector.load %arg6[%c0_12, %c0_13, %c0_14, %c0_15] : memref<1x4x8x8xf32, #tpu.memory_space<vmem>>, vector<1x1x8x8xf32>
    %16 = vector.shape_cast %15 : vector<1x1x8x8xf32> to vector<8x8xf32>
    %17 = vector.shape_cast %14 : vector<8x8xf32> to vector<1x1x8x8xf32>
    tpu.vector_store %arg6[%c0_12, %c0_13, %c0_14, %c0_15], %17 {strides = array<i32>} : memref<1x4x8x8xf32, #tpu.memory_space<vmem>>, vector<1x1x8x8xf32>,
    %cst_16 = arith.constant dense<0xFF800000> : vector<8xf32>
    %18 = vector.multi_reduction <maximumf>, %14, %cst_16 [1] : vector<8x8xf32> to vector<8xf32>
    %19 = vector.shape_cast %18 : vector<8xf32> to vector<8x1xf32>
    %20 = vector.broadcast %19 : vector<8x1xf32> to vector<8x8xf32>
    %21 = arith.subf %14, %20 : vector<8x8xf32>
    %22 = math.exp %21 : vector<8x8xf32>
    %cst_17 = arith.constant dense<0.000000e+00> : vector<8xf32>
    %23 = vector.multi_reduction <add>, %22, %cst_17 [1] : vector<8x8xf32> to vector<8xf32>
    %24 = vector.shape_cast %23 : vector<8xf32> to vector<8x1xf32>
    %25 = tpu.reciprocal %24 {approx = true} : vector<8x1xf32> -> vector<8x1xf32>
    %26 = vector.broadcast %25 : vector<8x1xf32> to vector<8x8xf32>
    %27 = arith.mulf %22, %26 : vector<8x8xf32>
    %28 = arith.truncf %27 : vector<8x8xf32> to vector<8x8xbf16>
    %cst_18 = arith.constant dense<0.000000e+00> : vector<8x16xf32>
    %29 = tpu.matmul %28, %11, %cst_18 {dimension_numbers = #tpu.dot_dimension_numbers<[1], [0], [0], [1], [0, 0, 1, 1], [], []>} : vector<8x8xbf16>, vector<8x16xbf16>, vector<8x16xf32> -> vector<8x16xf32>
    %30 = arith.truncf %29 : vector<8x16xf32> to vector<8x16xbf16>
    %c0_19 = arith.constant 0 : index
    %c0_20 = arith.constant 0 : index
    %c0_21 = arith.constant 0 : index
    %31 = vector.load %arg5[%c0_19, %c0_20, %c0_21] : memref<1x8x64xbf16, #tpu.memory_space<vmem>>, vector<1x8x16xbf16>
    %32 = vector.shape_cast %31 : vector<1x8x16xbf16> to vector<8x16xbf16>
    %33 = vector.shape_cast %30 : vector<8x16xbf16> to vector<1x8x16xbf16>
    tpu.vector_store %arg5[%c0_19, %c0_20, %c0_21], %33 {strides = array<i32>} : memref<1x8x64xbf16, #tpu.memory_space<vmem>>, vector<1x8x16xbf16>,
    %34 = vector.extract_strided_slice %1 {offsets = [0, 1, 0], sizes = [8, 1, 16], strides = [1, 1, 1]} : vector<8x4x16xbf16> to vector<8x1x16xbf16>
    %35 = vector.shape_cast %34 : vector<8x1x16xbf16> to vector<8x16xbf16>
    %36 = vector.extract_strided_slice %3 {offsets = [0, 1, 0], sizes = [8, 1, 16], strides = [1, 1, 1]} : vector<8x4x16xbf16> to vector<8x1x16xbf16>
    %37 = vector.shape_cast %36 : vector<8x1x16xbf16> to vector<8x16xbf16>
    %38 = vector.extract_strided_slice %5 {offsets = [0, 1, 0], sizes = [8, 1, 16], strides = [1, 1, 1]} : vector<8x4x16xbf16> to vector<8x1x16xbf16>
    %39 = vector.shape_cast %38 : vector<8x1x16xbf16> to vector<8x16xbf16>
    %cst_22 = arith.constant dense<0.000000e+00> : vector<8x8xf32>
    %40 = tpu.matmul %35, %37, %cst_22 {dimension_numbers = #tpu.dot_dimension_numbers<[1], [1], [0], [0], [0, 0, 1, 0], [], []>} : vector<8x16xbf16>, vector<8x16xbf16>, vector<8x8xf32> -> vector<8x8xf32>
    %cst_23 = arith.constant 2.500000e-01 : f32
    %41 = vector.broadcast %cst_23 : f32 to vector<8x8xf32>
    %42 = arith.mulf %40, %41 : vector<8x8xf32>
    %c0_24 = arith.constant 0 : index
    %c1 = arith.constant 1 : index
    %c0_25 = arith.constant 0 : index
    %c0_26 = arith.constant 0 : index
    %43 = vector.load %arg6[%c0_24, %c1, %c0_25, %c0_26] : memref<1x4x8x8xf32, #tpu.memory_space<vmem>>, vector<1x1x8x8xf32>
    %44 = vector.shape_cast %43 : vector<1x1x8x8xf32> to vector<8x8xf32>
    %45 = vector.shape_cast %42 : vector<8x8xf32> to vector<1x1x8x8xf32>
    tpu.vector_store %arg6[%c0_24, %c1, %c0_25, %c0_26], %45 {strides = array<i32>} : memref<1x4x8x8xf32, #tpu.memory_space<vmem>>, vector<1x1x8x8xf32>,
    %cst_27 = arith.constant dense<0xFF800000> : vector<8xf32>
    %46 = vector.multi_reduction <maximumf>, %42, %cst_27 [1] : vector<8x8xf32> to vector<8xf32>
    %47 = vector.shape_cast %46 : vector<8xf32> to vector<8x1xf32>
    %48 = vector.broadcast %47 : vector<8x1xf32> to vector<8x8xf32>
    %49 = arith.subf %42, %48 : vector<8x8xf32>
    %50 = math.exp %49 : vector<8x8xf32>
    %cst_28 = arith.constant dense<0.000000e+00> : vector<8xf32>
    %51 = vector.multi_reduction <add>, %50, %cst_28 [1] : vector<8x8xf32> to vector<8xf32>
    %52 = vector.shape_cast %51 : vector<8xf32> to vector<8x1xf32>
    %53 = tpu.reciprocal %52 {approx = true} : vector<8x1xf32> -> vector<8x1xf32>
    %54 = vector.broadcast %53 : vector<8x1xf32> to vector<8x8xf32>
    %55 = arith.mulf %50, %54 : vector<8x8xf32>
    %56 = arith.truncf %55 : vector<8x8xf32> to vector<8x8xbf16>
    %cst_29 = arith.constant dense<0.000000e+00> : vector<8x16xf32>
    %57 = tpu.matmul %56, %39, %cst_29 {dimension_numbers = #tpu.dot_dimension_numbers<[1], [0], [0], [1], [0, 0, 1, 1], [], []>} : vector<8x8xbf16>, vector<8x16xbf16>, vector<8x16xf32> -> vector<8x16xf32>
    %58 = arith.truncf %57 : vector<8x16xf32> to vector<8x16xbf16>
    %c0_30 = arith.constant 0 : index
    %c0_31 = arith.constant 0 : index
    %c16 = arith.constant 16 : index
    %59 = vector.load %arg5[%c0_30, %c0_31, %c16] : memref<1x8x64xbf16, #tpu.memory_space<vmem>>, vector<1x8x16xbf16>
    %60 = vector.shape_cast %59 : vector<1x8x16xbf16> to vector<8x16xbf16>
    %61 = vector.shape_cast %58 : vector<8x16xbf16> to vector<1x8x16xbf16>
    tpu.vector_store %arg5[%c0_30, %c0_31, %c16], %61 {strides = array<i32>} : memref<1x8x64xbf16, #tpu.memory_space<vmem>>, vector<1x8x16xbf16>,
    %62 = vector.extract_strided_slice %1 {offsets = [0, 2, 0], sizes = [8, 1, 16], strides = [1, 1, 1]} : vector<8x4x16xbf16> to vector<8x1x16xbf16>
    %63 = vector.shape_cast %62 : vector<8x1x16xbf16> to vector<8x16xbf16>
    %64 = vector.extract_strided_slice %3 {offsets = [0, 2, 0], sizes = [8, 1, 16], strides = [1, 1, 1]} : vector<8x4x16xbf16> to vector<8x1x16xbf16>
    %65 = vector.shape_cast %64 : vector<8x1x16xbf16> to vector<8x16xbf16>
    %66 = vector.extract_strided_slice %5 {offsets = [0, 2, 0], sizes = [8, 1, 16], strides = [1, 1, 1]} : vector<8x4x16xbf16> to vector<8x1x16xbf16>
    %67 = vector.shape_cast %66 : vector<8x1x16xbf16> to vector<8x16xbf16>
    %cst_32 = arith.constant dense<0.000000e+00> : vector<8x8xf32>
    %68 = tpu.matmul %63, %65, %cst_32 {dimension_numbers = #tpu.dot_dimension_numbers<[1], [1], [0], [0], [0, 0, 1, 0], [], []>} : vector<8x16xbf16>, vector<8x16xbf16>, vector<8x8xf32> -> vector<8x8xf32>
    %cst_33 = arith.constant 2.500000e-01 : f32
    %69 = vector.broadcast %cst_33 : f32 to vector<8x8xf32>
    %70 = arith.mulf %68, %69 : vector<8x8xf32>
    %c0_34 = arith.constant 0 : index
    %c2 = arith.constant 2 : index
    %c0_35 = arith.constant 0 : index
    %c0_36 = arith.constant 0 : index
    %71 = vector.load %arg6[%c0_34, %c2, %c0_35, %c0_36] : memref<1x4x8x8xf32, #tpu.memory_space<vmem>>, vector<1x1x8x8xf32>
    %72 = vector.shape_cast %71 : vector<1x1x8x8xf32> to vector<8x8xf32>
    %73 = vector.shape_cast %70 : vector<8x8xf32> to vector<1x1x8x8xf32>
    tpu.vector_store %arg6[%c0_34, %c2, %c0_35, %c0_36], %73 {strides = array<i32>} : memref<1x4x8x8xf32, #tpu.memory_space<vmem>>, vector<1x1x8x8xf32>,
    %cst_37 = arith.constant dense<0xFF800000> : vector<8xf32>
    %74 = vector.multi_reduction <maximumf>, %70, %cst_37 [1] : vector<8x8xf32> to vector<8xf32>
    %75 = vector.shape_cast %74 : vector<8xf32> to vector<8x1xf32>
    %76 = vector.broadcast %75 : vector<8x1xf32> to vector<8x8xf32>
    %77 = arith.subf %70, %76 : vector<8x8xf32>
    %78 = math.exp %77 : vector<8x8xf32>
    %cst_38 = arith.constant dense<0.000000e+00> : vector<8xf32>
    %79 = vector.multi_reduction <add>, %78, %cst_38 [1] : vector<8x8xf32> to vector<8xf32>
    %80 = vector.shape_cast %79 : vector<8xf32> to vector<8x1xf32>
    %81 = tpu.reciprocal %80 {approx = true} : vector<8x1xf32> -> vector<8x1xf32>
    %82 = vector.broadcast %81 : vector<8x1xf32> to vector<8x8xf32>
    %83 = arith.mulf %78, %82 : vector<8x8xf32>
    %84 = arith.truncf %83 : vector<8x8xf32> to vector<8x8xbf16>
    %cst_39 = arith.constant dense<0.000000e+00> : vector<8x16xf32>
    %85 = tpu.matmul %84, %67, %cst_39 {dimension_numbers = #tpu.dot_dimension_numbers<[1], [0], [0], [1], [0, 0, 1, 1], [], []>} : vector<8x8xbf16>, vector<8x16xbf16>, vector<8x16xf32> -> vector<8x16xf32>
    %86 = arith.truncf %85 : vector<8x16xf32> to vector<8x16xbf16>
    %c0_40 = arith.constant 0 : index
    %c0_41 = arith.constant 0 : index
    %c32 = arith.constant 32 : index
    %87 = vector.load %arg5[%c0_40, %c0_41, %c32] : memref<1x8x64xbf16, #tpu.memory_space<vmem>>, vector<1x8x16xbf16>
    %88 = vector.shape_cast %87 : vector<1x8x16xbf16> to vector<8x16xbf16>
    %89 = vector.shape_cast %86 : vector<8x16xbf16> to vector<1x8x16xbf16>
    tpu.vector_store %arg5[%c0_40, %c0_41, %c32], %89 {strides = array<i32>} : memref<1x8x64xbf16, #tpu.memory_space<vmem>>, vector<1x8x16xbf16>,
    %90 = vector.extract_strided_slice %1 {offsets = [0, 3, 0], sizes = [8, 1, 16], strides = [1, 1, 1]} : vector<8x4x16xbf16> to vector<8x1x16xbf16>
    %91 = vector.shape_cast %90 : vector<8x1x16xbf16> to vector<8x16xbf16>
    %92 = vector.extract_strided_slice %3 {offsets = [0, 3, 0], sizes = [8, 1, 16], strides = [1, 1, 1]} : vector<8x4x16xbf16> to vector<8x1x16xbf16>
    %93 = vector.shape_cast %92 : vector<8x1x16xbf16> to vector<8x16xbf16>
    %94 = vector.extract_strided_slice %5 {offsets = [0, 3, 0], sizes = [8, 1, 16], strides = [1, 1, 1]} : vector<8x4x16xbf16> to vector<8x1x16xbf16>
    %95 = vector.shape_cast %94 : vector<8x1x16xbf16> to vector<8x16xbf16>
    %cst_42 = arith.constant dense<0.000000e+00> : vector<8x8xf32>
    %96 = tpu.matmul %91, %93, %cst_42 {dimension_numbers = #tpu.dot_dimension_numbers<[1], [1], [0], [0], [0, 0, 1, 0], [], []>} : vector<8x16xbf16>, vector<8x16xbf16>, vector<8x8xf32> -> vector<8x8xf32>
    %cst_43 = arith.constant 2.500000e-01 : f32
    %97 = vector.broadcast %cst_43 : f32 to vector<8x8xf32>
    %98 = arith.mulf %96, %97 : vector<8x8xf32>
    %c0_44 = arith.constant 0 : index
    %c3 = arith.constant 3 : index
    %c0_45 = arith.constant 0 : index
    %c0_46 = arith.constant 0 : index
    %99 = vector.load %arg6[%c0_44, %c3, %c0_45, %c0_46] : memref<1x4x8x8xf32, #tpu.memory_space<vmem>>, vector<1x1x8x8xf32>
    %100 = vector.shape_cast %99 : vector<1x1x8x8xf32> to vector<8x8xf32>
    %101 = vector.shape_cast %98 : vector<8x8xf32> to vector<1x1x8x8xf32>
    tpu.vector_store %arg6[%c0_44, %c3, %c0_45, %c0_46], %101 {strides = array<i32>} : memref<1x4x8x8xf32, #tpu.memory_space<vmem>>, vector<1x1x8x8xf32>,
    %cst_47 = arith.constant dense<0xFF800000> : vector<8xf32>
    %102 = vector.multi_reduction <maximumf>, %98, %cst_47 [1] : vector<8x8xf32> to vector<8xf32>
    %103 = vector.shape_cast %102 : vector<8xf32> to vector<8x1xf32>
    %104 = vector.broadcast %103 : vector<8x1xf32> to vector<8x8xf32>
    %105 = arith.subf %98, %104 : vector<8x8xf32>
    %106 = math.exp %105 : vector<8x8xf32>
    %cst_48 = arith.constant dense<0.000000e+00> : vector<8xf32>
    %107 = vector.multi_reduction <add>, %106, %cst_48 [1] : vector<8x8xf32> to vector<8xf32>
    %108 = vector.shape_cast %107 : vector<8xf32> to vector<8x1xf32>
    %109 = tpu.reciprocal %108 {approx = true} : vector<8x1xf32> -> vector<8x1xf32>
    %110 = vector.broadcast %109 : vector<8x1xf32> to vector<8x8xf32>
    %111 = arith.mulf %106, %110 : vector<8x8xf32>
    %112 = arith.truncf %111 : vector<8x8xf32> to vector<8x8xbf16>
    %cst_49 = arith.constant dense<0.000000e+00> : vector<8x16xf32>
    %113 = tpu.matmul %112, %95, %cst_49 {dimension_numbers = #tpu.dot_dimension_numbers<[1], [0], [0], [1], [0, 0, 1, 1], [], []>} : vector<8x8xbf16>, vector<8x16xbf16>, vector<8x16xf32> -> vector<8x16xf32>
    %114 = arith.truncf %113 : vector<8x16xf32> to vector<8x16xbf16>
    %c0_50 = arith.constant 0 : index
    %c0_51 = arith.constant 0 : index
    %c48 = arith.constant 48 : index
    %115 = vector.load %arg5[%c0_50, %c0_51, %c48] : memref<1x8x64xbf16, #tpu.memory_space<vmem>>, vector<1x8x16xbf16>
    %116 = vector.shape_cast %115 : vector<1x8x16xbf16> to vector<8x16xbf16>
    %117 = vector.shape_cast %114 : vector<8x16xbf16> to vector<1x8x16xbf16>
    tpu.vector_store %arg5[%c0_50, %c0_51, %c48], %117 {strides = array<i32>} : memref<1x8x64xbf16, #tpu.memory_space<vmem>>, vector<1x8x16xbf16>,
    return
  }
  func.func @transform_0(%arg0: i32, %arg1: i32) -> (i32, i32, i32, i32) {
    %c0_i32 = arith.constant 0 : i32
    %c0_i32_0 = arith.constant 0 : i32
    %c0_i32_1 = arith.constant 0 : i32
    return %arg0, %arg1, %c0_i32, %c0_i32_0 : i32, i32, i32, i32
  }
  func.func @transform_1(%arg0: i32, %arg1: i32) -> (i32, i32, i32, i32) {
    %c0_i32 = arith.constant 0 : i32
    %c0_i32_0 = arith.constant 0 : i32
    %c0_i32_1 = arith.constant 0 : i32
    %c0_i32_2 = arith.constant 0 : i32
    return %arg0, %c0_i32, %c0_i32_0, %c0_i32_1 : i32, i32, i32, i32
  }
  func.func @transform_2(%arg0: i32, %arg1: i32) -> (i32, i32, i32, i32) {
    %c0_i32 = arith.constant 0 : i32
    %c0_i32_0 = arith.constant 0 : i32
    %c0_i32_1 = arith.constant 0 : i32
    %c0_i32_2 = arith.constant 0 : i32
    return %arg0, %c0_i32, %c0_i32_0, %c0_i32_1 : i32, i32, i32, i32
  }
  func.func @transform_3(%arg0: i32, %arg1: i32) -> (i32, i32, i32) {
    %c0_i32 = arith.constant 0 : i32
    %c0_i32_0 = arith.constant 0 : i32
    return %arg0, %arg1, %c0_i32 : i32, i32, i32
  }
  func.func @transform_4(%arg0: i32, %arg1: i32) -> (i32, i32, i32, i32) {
    %c0_i32 = arith.constant 0 : i32
    %c0_i32_0 = arith.constant 0 : i32
    %c0_i32_1 = arith.constant 0 : i32
    return %arg0, %c0_i32, %arg1, %c0_i32_0 : i32, i32, i32, i32
  }
}

</mosaic_0001>

<llo_original>
// kernel: _lambda_.5
$region0: #{_lambda_.5}
  #allocation0 [shape = 'u32[]', space=smem, size = 0x4, offset = 0x4, fixed_abs, tag = 'smem constant byte address 0x4 - core index']
  #allocation1 [shape = 'u32[72,128]{1,0:T(1,128)}', space=vmem, size = 0x9000, scoped, tag = 'internal scratch']
  #allocation2 [shape = 'f32[16,64]{1,0:T(8,128)}', space=vmem, size = 0x2000, scoped, tag = 'scratch operand']
  %s0 = inlined_call_operand.vmem [shape: bf16[16,32], index: 0, kind: input, shape index: {}]
  %s1 = inlined_call_operand.vmem [shape: bf16[64,32], index: 1, kind: input, shape index: {}]
  %s2 = inlined_call_operand.vmem [shape: f32[1,64], index: 2, kind: input, shape index: {}]
  %s3 = inlined_call_operand.vmem [shape: bf16[16,64], index: 3, kind: output, shape index: {}]
  %s4 = sld [smem:[#allocation0]]
  $region30: #{_lambda_.5} parent=0
    _
  %s6 = ssub.s32 1, %s4
  %s7 = scalar_select 0, %s6, %s4
  // Predicated region
  $region2: #{_lambda_.5} parent=0 // pred_check
    _
  $region3: #{_lambda_.5} parent=0 // pred_check_branch
    %9 = sbr.rel (0) target = $region5
  $region4: #{_lambda_.5} parent=0 // pred_region
    _
  $region5: #{_lambda_.5} parent=0 // pred_fallthru
    _
  // Predicated region
  $region6: #{_lambda_.5} parent=0 // pred_check
    _
  $region7: #{_lambda_.5} parent=0 // pred_check_branch
    %11 = sbr.rel (0) target = $region9
  $region8: #{_lambda_.5} parent=0 // pred_region
    _
  $region9: #{_lambda_.5} parent=0 // pred_fallthru
    _
  // Predicated region
  $region10: #{_lambda_.5} parent=0 // pred_check
    _
  $region11: #{_lambda_.5} parent=0 // pred_check_branch
    %13 = sbr.rel (0) target = $region13
  $region12: #{_lambda_.5} parent=0 // pred_region
    _
  $region13: #{_lambda_.5} parent=0 // pred_fallthru
    _
  %p15 = scmp.eq.s32.totalorder 0, 0
  // Predicated region
  $region14: #{_lambda_.5} parent=0 // pred_check
    %p16 = pneg %p15
  $region15: #{_lambda_.5} parent=0 // pred_check_branch
    %18 = sbr.rel (%p16) target = $region17
  $region16: #{_lambda_.5} parent=0 // pred_region
    %vm19 = vcmask 523264
    %20 = vst.msk [vmem:[#allocation2] sm:$0xff] %vm19, 0.0
    %21 = vst.msk [vmem:[#allocation2 + $0x8] sm:$0xff] %vm19, 0.0
  $region17: #{_lambda_.5} parent=0 // pred_fallthru
    _
  %v22 = vld [vmem:[#allocation2] sm:$0xff]
  %v23 = vld [vmem:[#allocation2 + $0x8] sm:$0xff]
  %v24 = vld [vmem:[%s0] sm:$0xf]
  %v25 = vld [vmem:[%s0 + $0x4] sm:$0xf]
  %v26 = vld [vmem:[%s1] sm:$0xf]
  %v27 = vld [vmem:[%s1 + $0x4] sm:$0xf]
  %v28 = vld [vmem:[%s1 + $0x8] sm:$0xf]
  %v29 = vld [vmem:[%s1 + $0xc] sm:$0xf]
  %v30 = vld [vmem:[%s1 + $0x10] sm:$0xf]
  %v31 = vld [vmem:[%s1 + $0x14] sm:$0xf]
  %v32 = vld [vmem:[%s1 + $0x18] sm:$0xf]
  %v33 = vld [vmem:[%s1 + $0x1c] sm:$0xf]
  %v36 = vunpack.c.l.b16 %v24
  %v37 = vunpack.c.l.b16 %v25
  %v38 = vpack.c.b16 %v37, %v36
  %v47 = vunpack.c.l.b16 %v26
  %v48 = vunpack.c.l.b16 %v27
  %v49 = vunpack.c.l.b16 %v28
  %v50 = vunpack.c.l.b16 %v29
  %v51 = vunpack.c.l.b16 %v30
  %v52 = vunpack.c.l.b16 %v31
  %v53 = vunpack.c.l.b16 %v32
  %v54 = vunpack.c.l.b16 %v33
  %v55 = vpack.c.b16 %v48, %v47
  %v56 = vpack.c.b16 %v50, %v49
  %v57 = vpack.c.b16 %v52, %v51
  %v58 = vpack.c.b16 %v54, %v53
  %vm59 = vcmask 261120
  %v61 = vsel %vm59, %v38, 0
  %v64 = vsel %vm59, %v55, 0
  %v67 = vsel %vm59, %v56, 0
  %v70 = vsel %vm59, %v57, 0
  %v73 = vsel %vm59, %v58, 0
  %75 = vmatpush.bf16.xpose.msra.mxu0 0
  %76 = vmatpush.bf16.xpose.msra.mxu0 0
  %77 = vmatpush.bf16.xpose.msra.mxu0 0
  %78 = vmatpush.bf16.xpose.msra.mxu0 0
  %79 = vmatpush.bf16.xpose.msra.mxu0 %v73
  %80 = vmatpush.bf16.xpose.msra.mxu0 %v70
  %81 = vmatpush.bf16.xpose.msra.mxu0 %v67
  %82 = vmatpush.bf16.xpose.msra.mxu0 %v64
  %83 = vmatmul.bf16.gmra.mxu0 %v61
  %v84 = vpop.f32.mrf.mxu0
  %v85 = vadd.f32 0.0, %v84
  %v86 = vpop.f32.mrf.mxu0
  %v87 = vadd.f32 0.0, %v86
  %88 = vdwg.mxu0
  %v89 = vadd.f32 %v22, %v85
  %v90 = vadd.f32 %v23, %v87
  %vm91 = vcmask 523264
  %92 = vst.msk [vmem:[#allocation2] sm:$0xff] %vm91, %v89
  %93 = vst.msk [vmem:[#allocation2 + $0x8] sm:$0xff] %vm91, %v90
  // Predicated region
  $region18: #{_lambda_.5} parent=0 // pred_check
    %p94 = pneg %p15
  $region19: #{_lambda_.5} parent=0 // pred_check_branch
    %96 = sbr.rel (%p94) target = $region21
  $region20: #{_lambda_.5} parent=0 // pred_region
    %v97 = vld [vmem:[#allocation2] sm:$0xff]
    %v98 = vld [vmem:[#allocation2 + $0x8] sm:$0xff]
    %v99 = vld [vmem:[%s2] sm:$0x1]
    %v101 = vperm.slane %v99, 0
    %v103 = vadd.f32 %v97, %v101
    %v104 = vadd.f32 %v98, %v101
    %v105 = vpack.c.bf16 %v103, %v103
    %v106 = vpack.c.bf16 %v104, %v104
    %vm107 = vcmask 519168
    %108 = vst.msk [vmem:[%s3] sm:$0xf] %vm107, %v105
    %109 = vst.msk [vmem:[%s3 + $0x4] sm:$0xf] %vm107, %v106
  $region21: #{_lambda_.5} parent=0 // pred_fallthru
    _
  // Predicated region
  $region22: #{_lambda_.5} parent=0 // pred_check
    _
  $region23: #{_lambda_.5} parent=0 // pred_check_branch
    %111 = sbr.rel (0) target = $region25
  $region24: #{_lambda_.5} parent=0 // pred_region
    _
  $region25: #{_lambda_.5} parent=0 // pred_fallthru
    _
  // Predicated region
  $region26: #{_lambda_.5} parent=0 // pred_check
    _
  $region27: #{_lambda_.5} parent=0 // pred_check_branch
    %113 = sbr.rel (0) target = $region29
  $region28: #{_lambda_.5} parent=0 // pred_region
    _
  $region29: #{_lambda_.5} parent=0 // pred_fallthru
    _

// kernel: _lambda_.9
$region0: #{_lambda_.9}
  #allocation0 [shape = 'u32[]', space=smem, size = 0x4, offset = 0x4, fixed_abs, tag = 'smem constant byte address 0x4 - core index']
  #allocation1 [shape = 'u32[72,128]{1,0:T(1,128)}', space=vmem, size = 0x9000, scoped, tag = 'internal scratch']
  #allocation2 [shape = 'f32[16,32]{1,0:T(8,128)}', space=vmem, size = 0x2000, scoped, tag = 'scratch operand']
  %s0 = inlined_call_operand.vmem [shape: bf16[16,64], index: 0, kind: input, shape index: {}]
  %s1 = inlined_call_operand.vmem [shape: bf16[32,64], index: 1, kind: input, shape index: {}]
  %s2 = inlined_call_operand.vmem [shape: f32[1,32], index: 2, kind: input, shape index: {}]
  %s3 = inlined_call_operand.hbm [shape: f32[16,32], index: 3, kind: output, shape index: {}]
  %s4 = sld [smem:[#allocation0]]
  $region30: #{_lambda_.9} parent=0
    _
  %s6 = ssub.s32 1, %s4
  %s7 = scalar_select 0, %s6, %s4
  $region1: #{_lambda_.9} parent=0
    #allocation3 [shape = 'u8[8192]{0}', space=vmem, size = 0x2000, scoped, tag = 'output window, operand 0, single buffered']
    #allocation4 [shape = 's32[1]{0}', space=sflag, size = 0x4, scoped, tag = 'scoped memory for _lambda_.9']
    %8 = vsyncpa [#allocation4], 0
    // Predicated region
    $region2: #{_lambda_.9} parent=1 // pred_check
      _
    $region3: #{_lambda_.9} parent=1 // pred_check_branch
      %10 = sbr.rel (0) target = $region5
    $region4: #{_lambda_.9} parent=1 // pred_region
      _
    $region5: #{_lambda_.9} parent=1 // pred_fallthru
      _
    // Predicated region
    $region6: #{_lambda_.9} parent=1 // pred_check
      _
    $region7: #{_lambda_.9} parent=1 // pred_check_branch
      %12 = sbr.rel (0) target = $region9
    $region8: #{_lambda_.9} parent=1 // pred_region
      _
    $region9: #{_lambda_.9} parent=1 // pred_fallthru
      _
    // Predicated region
    $region10: #{_lambda_.9} parent=1 // pred_check
      _
    $region11: #{_lambda_.9} parent=1 // pred_check_branch
      %14 = sbr.rel (0) target = $region13
    $region12: #{_lambda_.9} parent=1 // pred_region
      _
    $region13: #{_lambda_.9} parent=1 // pred_fallthru
      _
    %p16 = scmp.eq.s32.totalorder 0, 0
    // Predicated region
    $region14: #{_lambda_.9} parent=1 // pred_check
      %p17 = pneg %p16
    $region15: #{_lambda_.9} parent=1 // pred_check_branch
      %19 = sbr.rel (%p17) target = $region17
    $region16: #{_lambda_.9} parent=1 // pred_region
      %vm20 = vcmask 261120
      %21 = vst.msk [vmem:[#allocation2] sm:$0xff] %vm20, 0.0
      %22 = vst.msk [vmem:[#allocation2 + $0x8] sm:$0xff] %vm20, 0.0
    $region17: #{_lambda_.9} parent=1 // pred_fallthru
      _
    %v23 = vld [vmem:[#allocation2] sm:$0xff]
    %v24 = vld [vmem:[#allocation2 + $0x8] sm:$0xff]
    %v25 = vld [vmem:[%s0] sm:$0xf]
    %v26 = vld [vmem:[%s0 + $0x4] sm:$0xf]
    %v27 = vld [vmem:[%s1] sm:$0xf]
    %v28 = vld [vmem:[%s1 + $0x4] sm:$0xf]
    %v29 = vld [vmem:[%s1 + $0x8] sm:$0xf]
    %v30 = vld [vmem:[%s1 + $0xc] sm:$0xf]
    %v33 = vunpack.c.l.b16 %v25
    %v34 = vunpack.c.l.b16 %v26
    %v35 = vpack.c.b16 %v34, %v33
    %v40 = vunpack.c.l.b16 %v27
    %v41 = vunpack.c.l.b16 %v28
    %v42 = vunpack.c.l.b16 %v29
    %v43 = vunpack.c.l.b16 %v30
    %v44 = vpack.c.b16 %v41, %v40
    %v45 = vpack.c.b16 %v43, %v42
    %vm46 = vcmask 523264
    %v48 = vsel %vm46, %v35, 0
    %v51 = vsel %vm46, %v44, 0
    %v54 = vsel %vm46, %v45, 0
    %56 = vmatpush.bf16.xpose.msra.mxu0 0
    %57 = vmatpush.bf16.xpose.msra.mxu0 0
    %58 = vmatpush.bf16.xpose.msra.mxu0 0
    %59 = vmatpush.bf16.xpose.msra.mxu0 0
    %60 = vmatpush.bf16.xpose.msra.mxu0 0
    %61 = vmatpush.bf16.xpose.msra.mxu0 0
    %62 = vmatpush.bf16.xpose.msra.mxu0 %v54
    %63 = vmatpush.bf16.xpose.msra.mxu0 %v51
    %64 = vmatmul.bf16.gmra.mxu0 %v48
    %v65 = vpop.f32.mrf.mxu0
    %v66 = vadd.f32 0.0, %v65
    %v67 = vpop.f32.mrf.mxu0
    %v68 = vadd.f32 0.0, %v67
    %69 = vdwg.mxu0
    %v70 = vadd.f32 %v23, %v66
    %v71 = vadd.f32 %v24, %v68
    %vm72 = vcmask 261120
    %73 = vst.msk [vmem:[#allocation2] sm:$0xff] %vm72, %v70
    %74 = vst.msk [vmem:[#allocation2 + $0x8] sm:$0xff] %vm72, %v71
    // Predicated region
    $region18: #{_lambda_.9} parent=1 // pred_check
      %p75 = pneg %p16
    $region19: #{_lambda_.9} parent=1 // pred_check_branch
      %77 = sbr.rel (%p75) target = $region21
    $region20: #{_lambda_.9} parent=1 // pred_region
      %v78 = vld [vmem:[#allocation2] sm:$0xff]
      %v79 = vld [vmem:[#allocation2 + $0x8] sm:$0xff]
      %v80 = vld [vmem:[%s2] sm:$0x1]
      %v82 = vperm.slane %v80, 0
      %v84 = vadd.f32 %v78, %v82
      %v85 = vadd.f32 %v79, %v82
      %86 = vst.msk [vmem:[#allocation3] sm:$0xff] %vm72, %v84
      %87 = vst.msk [vmem:[#allocation3 + $0x8] sm:$0xff] %vm72, %v85
    $region21: #{_lambda_.9} parent=1 // pred_fallthru
      _
    // Predicated region
    $region22: #{_lambda_.9} parent=1 // pred_check
      _
    $region23: #{_lambda_.9} parent=1 // pred_check_branch
      %89 = sbr.rel (0) target = $region25
    $region24: #{_lambda_.9} parent=1 // pred_region
      %91 = vsyncadd [#allocation4], 0
      %s92 = sshll.u32 [#allocation3], 4
      %s93 = int_to_ptr.vmem [resolvable:$true] %s92
      %s94 = sshll.u32 %s3, 4
      %s95 = int_to_ptr.hbm [resolvable:$true] %s94
      %100 = dma.vmem_to_hbm [thread:$0]  %s93, 256, %s95, [#allocation4], 128, 128, 8
    $region25: #{_lambda_.9} parent=1 // pred_fallthru
      _
    // Predicated region
    $region26: #{_lambda_.9} parent=1 // pred_check
      _
    $region27: #{_lambda_.9} parent=1 // pred_check_branch
      %102 = sbr.rel (0) target = $region29
    $region28: #{_lambda_.9} parent=1 // pred_region
      %104 = dma.done [#allocation4], 256
    $region29: #{_lambda_.9} parent=1 // pred_fallthru
      _
    %105 = vsyncpa [#allocation4], 1

// kernel: _lambda_.8
$region0: #{_lambda_.8}
  #allocation0 [shape = 'u32[]', space=smem, size = 0x4, offset = 0x4, fixed_abs, tag = 'smem constant byte address 0x4 - core index']
  #allocation1 [shape = 'u32[72,128]{1,0:T(1,128)}', space=vmem, size = 0x9000, scoped, tag = 'internal scratch']
  %s0 = inlined_call_operand.vmem [shape: bf16[2,8,4,16], index: 0, kind: input, shape index: {}]
  %s1 = inlined_call_operand.vmem [shape: bf16[2,8,4,16], index: 1, kind: input, shape index: {}]
  %s2 = inlined_call_operand.vmem [shape: bf16[2,8,4,16], index: 2, kind: input, shape index: {}]
  %s3 = inlined_call_operand.vmem [shape: bf16[2,8,64], index: 3, kind: output, shape index: {0}]
  %s4 = inlined_call_operand.hbm [shape: f32[2,4,8,8], index: 4, kind: output, shape index: {1}]
  %5 = xla_tuple %s3, %s4
  %s6 = sld [smem:[#allocation0]]
  $region53: #{_lambda_.8} parent=0
    _
  %s8 = ssub.s32 1, %s6
  %s9 = scalar_select 0, %s8, %s6
  $region1: #{_lambda_.8} parent=0
    #allocation2 [shape = 'u8[32768]{0}', space=vmem, size = 0x8000, scoped, tag = 'output window, operand 1']
    #allocation3 [shape = 's32[2]{0}', space=sflag, size = 0x8, scoped, tag = 'scoped memory for _lambda_.8']
    %10 = vsyncpa [#allocation3], 0
    %s11 = scalar_lea.sflag [#allocation3], 1
    %12 = vsyncpa %s11, 0
    loop: start=0, step=1, limit=4
    $region2: #{_lambda_.8} parent=1 // loop_pre_header
      _
    $region3: #{_lambda_.8} parent=1 // loop_header
      %s14 = sphi 0, %s18
      %p15 = scmp.ge.s32.totalorder %s14, 4
      %s21 = sphi 0, %s33
      %s22 = sphi 0, %s29
      %s23 = sphi 0, %s21
      %s24 = sphi 0, %s22
      %s25 = sphi 0, %s23
      %s26 = sphi 0, %s24
      %s38 = sphi 0, %s40
      %s41 = sphi 0, %s38
      %s42 = sphi 0, %s41
      %s58 = sphi 0, %s42
      %s64 = sphi 0, %s66
      %s67 = sphi 0, %s64
      %s68 = sphi 0, %s67
      %s84 = sphi 0, %s68
      %s90 = sphi 0, %s92
      %s93 = sphi 0, %s90
      %s94 = sphi 0, %s93
      %s110 = sphi 0, %s94
      %s118 = sphi 0, %s120
      %s121 = sphi 0, %s118
      %s122 = sphi 0, %s121
      %s138 = sphi 0, %s122
      %s146 = sphi 0, %s148
      %s149 = sphi 0, %s146
      %s150 = sphi 0, %s149
      %s166 = sphi 0, %s150
    $region4: #{_lambda_.8} parent=1 // loop_header_branch
      %17 = sbr.rel (%p15) target = $region8
    $region5: #{_lambda_.8} parent=1 // loop_body
      %s19 = ssub.s32 %s14, 1
      %s20 = ssub.s32 %s14, 2
      %s27 = sadd.s32 1, %s22
      %p28 = scmp.ge.s32.totalorder %s27, 1
      %s29 = scalar_select %p28, 0, %s27
      %s30 = sadd.s32 1, %s21
      %s31 = scalar_select %p28, %s30, %s21
      %p32 = scmp.ge.s32.totalorder %s31, 2
      %s33 = scalar_select %p32, 0, %s31
      %s34 = ssub.s32 %s21, %s33
      %s35 = ssub.s32 %s22, %s29
      %s36 = sor.u32 %s34, %s35
      %p37 = scmp.eq.s32.totalorder %s36, 0
      %s39 = sadd.s32 %s38, 1
      %s40 = scalar_select %p37, %s38, %s39
      %p43 = pneg %p37
      %p44 = scmp.eq.s32.totalorder %s14, 1
      %p45 = por %p43, %p44
      %p46 = scmp.ne.s32.totalorder %s38, %s41
      %p47 = scmp.eq.s32.totalorder %s14, 0
      %p48 = por %p46, %p47
      %p49 = scmp.ne.s32.totalorder %s38, %s41
      %p50 = scmp.eq.s32.totalorder %s19, 1
      %p51 = por %p49, %p50
      %p52 = scmp.ne.s32.totalorder %s41, %s42
      %p53 = scmp.eq.s32.totalorder %s19, 0
      %p54 = por %p52, %p53
      %p55 = scmp.ne.s32.totalorder %s41, %s42
      %p56 = scmp.eq.s32.totalorder %s20, 1
      %p57 = por %p55, %p56
      %p59 = scmp.ne.s32.totalorder %s42, %s58
      %p60 = scmp.eq.s32.totalorder %s20, 0
      %p61 = por %p59, %p60
      %s62 = ssub.s32 %s21, %s33
      %p63 = scmp.eq.s32.totalorder %s62, 0
      %s65 = sadd.s32 %s64, 1
      %s66 = scalar_select %p63, %s64, %s65
      %p69 = pneg %p63
      %p70 = scmp.eq.s32.totalorder %s14, 1
      %p71 = por %p69, %p70
      %p72 = scmp.ne.s32.totalorder %s64, %s67
      %p73 = scmp.eq.s32.totalorder %s14, 0
      %p74 = por %p72, %p73
      %p75 = scmp.ne.s32.totalorder %s64, %s67
      %p76 = scmp.eq.s32.totalorder %s19, 1
      %p77 = por %p75, %p76
      %p78 = scmp.ne.s32.totalorder %s67, %s68
      %p79 = scmp.eq.s32.totalorder %s19, 0
      %p80 = por %p78, %p79
      %p81 = scmp.ne.s32.totalorder %s67, %s68
      %p82 = scmp.eq.s32.totalorder %s20, 1
      %p83 = por %p81, %p82
      %p85 = scmp.ne.s32.totalorder %s68, %s84
      %p86 = scmp.eq.s32.totalorder %s20, 0
      %p87 = por %p85, %p86
      %s88 = ssub.s32 %s21, %s33
      %p89 = scmp.eq.s32.totalorder %s88, 0
      %s91 = sadd.s32 %s90, 1
      %s92 = scalar_select %p89, %s90, %s91
      %p95 = pneg %p89
      %p96 = scmp.eq.s32.totalorder %s14, 1
      %p97 = por %p95, %p96
      %p98 = scmp.ne.s32.totalorder %s90, %s93
      %p99 = scmp.eq.s32.totalorder %s14, 0
      %p100 = por %p98, %p99
      %p101 = scmp.ne.s32.totalorder %s90, %s93
      %p102 = scmp.eq.s32.totalorder %s19, 1
      %p103 = por %p101, %p102
      %p104 = scmp.ne.s32.totalorder %s93, %s94
      %p105 = scmp.eq.s32.totalorder %s19, 0
      %p106 = por %p104, %p105
      %p107 = scmp.ne.s32.totalorder %s93, %s94
      %p108 = scmp.eq.s32.totalorder %s20, 1
      %p109 = por %p107, %p108
      %p111 = scmp.ne.s32.totalorder %s94, %s110
      %p112 = scmp.eq.s32.totalorder %s20, 0
      %p113 = por %p111, %p112
      %s114 = ssub.s32 %s21, %s33
      %s115 = ssub.s32 %s22, %s29
      %s116 = sor.u32 %s114, %s115
      %p117 = scmp.eq.s32.totalorder %s116, 0
      %s119 = sadd.s32 %s118, 1
      %s120 = scalar_select %p117, %s118, %s119
      %p123 = pneg %p117
      %p124 = scmp.eq.s32.totalorder %s14, 1
      %p125 = por %p123, %p124
      %p126 = scmp.ne.s32.totalorder %s118, %s121
      %p127 = scmp.eq.s32.totalorder %s14, 0
      %p128 = por %p126, %p127
      %p129 = scmp.ne.s32.totalorder %s118, %s121
      %p130 = scmp.eq.s32.totalorder %s19, 1
      %p131 = por %p129, %p130
      %p132 = scmp.ne.s32.totalorder %s121, %s122
      %p133 = scmp.eq.s32.totalorder %s19, 0
      %p134 = por %p132, %p133
      %p135 = scmp.ne.s32.totalorder %s121, %s122
      %p136 = scmp.eq.s32.totalorder %s20, 1
      %p137 = por %p135, %p136
      %p139 = scmp.ne.s32.totalorder %s122, %s138
      %p140 = scmp.eq.s32.totalorder %s20, 0
      %p141 = por %p139, %p140
      %s142 = ssub.s32 %s21, %s33
      %s143 = ssub.s32 %s22, %s29
      %s144 = sor.u32 %s142, %s143
      %p145 = scmp.eq.s32.totalorder %s144, 0
      %s147 = sadd.s32 %s146, 1
      %s148 = scalar_select %p145, %s146, %s147
      %p151 = pneg %p145
      %p152 = scmp.eq.s32.totalorder %s14, 1
      %p153 = por %p151, %p152
      %p154 = scmp.ne.s32.totalorder %s146, %s149
      %p155 = scmp.eq.s32.totalorder %s14, 0
      %p156 = por %p154, %p155
      %p157 = scmp.ne.s32.totalorder %s146, %s149
      %p158 = scmp.eq.s32.totalorder %s19, 1
      %p159 = por %p157, %p158
      %p160 = scmp.ne.s32.totalorder %s149, %s150
      %p161 = scmp.eq.s32.totalorder %s19, 0
      %p162 = por %p160, %p161
      %p163 = scmp.ne.s32.totalorder %s149, %s150
      %p164 = scmp.eq.s32.totalorder %s20, 1
      %p165 = por %p163, %p164
      %p167 = scmp.ne.s32.totalorder %s150, %s166
      %p168 = scmp.eq.s32.totalorder %s20, 0
      %p169 = por %p167, %p168
      %p170 = scmp.le.s32.totalorder 1, %s14
      %p171 = scmp.lt.s32.totalorder %s14, 3
      %p172 = pnand %p170, %p171
      %p173 = pneg %p172
      // Predicated region
      $region9: #{_lambda_.8} parent=5 // pred_check
        _
      $region10: #{_lambda_.8} parent=5 // pred_check_branch
        %175 = sbr.rel (%p172) target = $region12
      $region11: #{_lambda_.8} parent=5 // pred_region
        %s176 = ssub.s32 %s14, 1
      $region12: #{_lambda_.8} parent=5 // pred_fallthru
        _
      %p177 = scmp.lt.s32.totalorder %s14, 2
      // Predicated region
      $region13: #{_lambda_.8} parent=5 // pred_check
        %p178 = pneg %p177
      $region14: #{_lambda_.8} parent=5 // pred_check_branch
        %180 = sbr.rel (%p178) target = $region16
      $region15: #{_lambda_.8} parent=5 // pred_region
        // Predicated region
        $region17: #{_lambda_.8} parent=15 // pred_check
          %p181 = pneg %p48
        $region18: #{_lambda_.8} parent=15 // pred_check_branch
          %183 = sbr.rel (%p181) target = $region20
        $region19: #{_lambda_.8} parent=15 // pred_region
          %s184 = smul.u32 8, %s22
          %p185 = scmp.lt.s32.totalorder %s21, 1
          %s186 = scalar_select %p185, %s21, 1
          %p187 = scmp.lt.s32.totalorder %s184, 7
          %s188 = scalar_select %p187, %s184, 7
          %s189 = smul.addr %s186, 8
          %s190 = sadd.s32 %s188, %s189
          %s191 = smul.addr %s190, 2
          %s192 = scalar_lea.vmem %s0, %s191
          %s193 = smul.u32 8, %s22
        $region20: #{_lambda_.8} parent=15 // pred_fallthru
          _
        // Predicated region
        $region21: #{_lambda_.8} parent=15 // pred_check
          %p194 = pneg %p74
        $region22: #{_lambda_.8} parent=15 // pred_check_branch
          %196 = sbr.rel (%p194) target = $region24
        $region23: #{_lambda_.8} parent=15 // pred_region
          %p197 = scmp.lt.s32.totalorder %s21, 1
          %s198 = scalar_select %p197, %s21, 1
          %s199 = smul.addr %s198, 8
          %s200 = smul.addr %s199, 2
          %s201 = scalar_lea.vmem %s1, %s200
        $region24: #{_lambda_.8} parent=15 // pred_fallthru
          _
        // Predicated region
        $region25: #{_lambda_.8} parent=15 // pred_check
          %p202 = pneg %p100
        $region26: #{_lambda_.8} parent=15 // pred_check_branch
          %204 = sbr.rel (%p202) target = $region28
        $region27: #{_lambda_.8} parent=15 // pred_region
          %p205 = scmp.lt.s32.totalorder %s21, 1
          %s206 = scalar_select %p205, %s21, 1
          %s207 = smul.addr %s206, 8
          %s208 = smul.addr %s207, 2
          %s209 = scalar_lea.vmem %s2, %s208
        $region28: #{_lambda_.8} parent=15 // pred_fallthru
          _
      $region16: #{_lambda_.8} parent=5 // pred_fallthru
        _
      %p210 = scmp.le.s32.totalorder 1, %s14
      %p211 = scmp.lt.s32.totalorder %s14, 3
      %p212 = pnand %p210, %p211
      %p213 = pneg %p212
      // Predicated region
      $region29: #{_lambda_.8} parent=5 // pred_check
        _
      $region30: #{_lambda_.8} parent=5 // pred_check_branch
        %215 = sbr.rel (%p212) target = $region32
      $region31: #{_lambda_.8} parent=5 // pred_region
        %s216 = ssub.s32 %s14, 1
        %s217 = smul.u32 8, %s24
        %p218 = scmp.lt.s32.totalorder %s23, 1
        %s219 = scalar_select %p218, %s23, 1
        %p220 = scmp.lt.s32.totalorder %s217, 7
        %s221 = scalar_select %p220, %s217, 7
        %s222 = smul.addr %s219, 8
        %s223 = sadd.s32 %s221, %s222
        %s224 = smul.addr %s223, 2
        %s225 = scalar_lea.vmem %s0, %s224
        %p226 = pneg %p54
        %p227 = pneg %p51
        %p228 = scmp.lt.s32.totalorder %s23, 1
        %s229 = scalar_select %p228, %s23, 1
        %s230 = smul.addr %s229, 8
        %s231 = smul.addr %s230, 2
        %s232 = scalar_lea.vmem %s1, %s231
        %p233 = pneg %p80
        %p234 = pneg %p77
        %p235 = scmp.lt.s32.totalorder %s23, 1
        %s236 = scalar_select %p235, %s23, 1
        %s237 = smul.addr %s236, 8
        %s238 = smul.addr %s237, 2
        %s239 = scalar_lea.vmem %s2, %s238
        %p240 = pneg %p106
        %p241 = pneg %p103
        %p242 = pneg %p134
        %p243 = pneg %p131
        %p244 = scmp.lt.s32.totalorder %s23, 1
        %s245 = scalar_select %p244, %s23, 1
        %p246 = scmp.lt.s32.totalorder %s24, 0
        %s247 = scalar_select %p246, %s24, 0
        %s248 = sadd.s32 %s247, %s245
        %s249 = smul.addr %s248, 4
        %s250 = scalar_lea.vmem %s3, %s249
        %p251 = pneg %p162
        %p252 = pneg %p159
        %s253 = sand.u32 %s149, 1
        %s254 = scalar_lea.sflag [#allocation3], %s253
        %s255 = sand.u32 %s149, 1
        %s256 = smul.addr %s255, 32
        %s257 = scalar_lea.vmem [#allocation2], %s256
        %s258 = smul.u32 8, %s24
        %p259 = scmp.lt.s32.totalorder %s23, 1
        %s260 = scalar_select %p259, %s23, 1
        %p261 = scmp.lt.s32.totalorder %s258, 7
        %s262 = scalar_select %p261, %s258, 7
        %s263 = smul.addr %s260, 8
        %s264 = sadd.s32 %s262, %s263
        %s265 = smul.addr %s264, 2
        %s266 = scalar_lea.vmem %s0, %s265
        %s267 = smul.u32 8, %s24
        %p268 = scmp.lt.s32.totalorder %s23, 1
        %s269 = scalar_select %p268, %s23, 1
        %s270 = smul.addr %s269, 8
        %s271 = smul.addr %s270, 2
        %s272 = scalar_lea.vmem %s1, %s271
        %p273 = scmp.lt.s32.totalorder %s23, 1
        %s274 = scalar_select %p273, %s23, 1
        %s275 = smul.addr %s274, 8
        %s276 = smul.addr %s275, 2
        %s277 = scalar_lea.vmem %s2, %s276
        %p278 = scmp.lt.s32.totalorder %s23, 1
        %s279 = scalar_select %p278, %s23, 1
        %p280 = scmp.lt.s32.totalorder %s24, 0
        %s281 = scalar_select %p280, %s24, 0
        %s282 = sadd.s32 %s281, %s279
        %s283 = smul.addr %s282, 4
        %s284 = scalar_lea.vmem %s3, %s283
        %v286 = vld [vmem:[%s266] sm:$0x3]
        %v287 = vld [vmem:[%s266 + $0x2] sm:$0x3]
        %v288 = vld [vmem:[%s266 + $0x4] sm:$0x3]
        %v289 = vld [vmem:[%s266 + $0x6] sm:$0x3]
        %v290 = vld [vmem:[%s266 + $0x8] sm:$0x3]
        %v291 = vld [vmem:[%s266 + $0xa] sm:$0x3]
        %v292 = vld [vmem:[%s266 + $0xc] sm:$0x3]
        %v293 = vld [vmem:[%s266 + $0xe] sm:$0x3]
        %v294 = vld [vmem:[%s272] sm:$0x3]
        %v295 = vld [vmem:[%s272 + $0x2] sm:$0x3]
        %v296 = vld [vmem:[%s272 + $0x4] sm:$0x3]
        %v297 = vld [vmem:[%s272 + $0x6] sm:$0x3]
        %v298 = vld [vmem:[%s272 + $0x8] sm:$0x3]
        %v299 = vld [vmem:[%s272 + $0xa] sm:$0x3]
        %v300 = vld [vmem:[%s272 + $0xc] sm:$0x3]
        %v301 = vld [vmem:[%s272 + $0xe] sm:$0x3]
        %v302 = vld [vmem:[%s277] sm:$0x3]
        %v303 = vld [vmem:[%s277 + $0x2] sm:$0x3]
        %v304 = vld [vmem:[%s277 + $0x4] sm:$0x3]
        %v305 = vld [vmem:[%s277 + $0x6] sm:$0x3]
        %v306 = vld [vmem:[%s277 + $0x8] sm:$0x3]
        %v307 = vld [vmem:[%s277 + $0xa] sm:$0x3]
        %v308 = vld [vmem:[%s277 + $0xc] sm:$0x3]
        %v309 = vld [vmem:[%s277 + $0xe] sm:$0x3]
        %311 = vst [vmem:[#allocation1] ss:$4 sm:$0xff] %v286
        %v312 = vld.sshfl [vmem:[#allocation1] sm:$0xff pattern:$0x73625140]
        %s315 = scalar_lea.vmem [#allocation1], 32
        %316 = vst [vmem:[%s315] ss:$4 sm:$0xff] %v287
        %v317 = vld.sshfl [vmem:[#allocation1 + $0x20] sm:$0xff pattern:$0x73625140]
        %320 = vst [vmem:[#allocation1] ss:$4 sm:$0xff] %v288
        %v321 = vld.sshfl [vmem:[#allocation1] sm:$0xff pattern:$0x73625140]
        %324 = vst [vmem:[%s315] ss:$4 sm:$0xff] %v289
        %v325 = vld.sshfl [vmem:[#allocation1 + $0x20] sm:$0xff pattern:$0x73625140]
        %328 = vst [vmem:[#allocation1] ss:$4 sm:$0xff] %v290
        %v329 = vld.sshfl [vmem:[#allocation1] sm:$0xff pattern:$0x73625140]
        %332 = vst [vmem:[%s315] ss:$4 sm:$0xff] %v291
        %v333 = vld.sshfl [vmem:[#allocation1 + $0x20] sm:$0xff pattern:$0x73625140]
        %336 = vst [vmem:[#allocation1] ss:$4 sm:$0xff] %v292
        %v337 = vld.sshfl [vmem:[#allocation1] sm:$0xff pattern:$0x73625140]
        %340 = vst [vmem:[%s315] ss:$4 sm:$0xff] %v293
        %v341 = vld.sshfl [vmem:[#allocation1 + $0x20] sm:$0xff pattern:$0x73625140]
        %v343 = vunpack.c.l.b16 %v312
        %v344 = vunpack.c.l.b16 %v317
        %v345 = vunpack.c.l.b16 %v321
        %v346 = vunpack.c.l.b16 %v325
        %v347 = vunpack.c.l.b16 %v329
        %v348 = vunpack.c.l.b16 %v333
        %v349 = vunpack.c.l.b16 %v337
        %v350 = vunpack.c.l.b16 %v341
        %v351 = vrot.slane %v344, 7
        %vm352 = vcmask 1041409
        %v353 = vsel %vm352, %v351, %v343
        %v354 = vrot.slane %v345, 6
        %vm355 = vcmask 1042434
        %v356 = vsel %vm355, %v354, %v353
        %v357 = vrot.slane %v346, 5
        %vm358 = vcmask 1043459
        %v359 = vsel %vm358, %v357, %v356
        %v360 = vrot.slane %v347, 4
        %vm361 = vcmask 1044484
        %v362 = vsel %vm361, %v360, %v359
        %v363 = vrot.slane %v348, 3
        %vm364 = vcmask 1045509
        %v365 = vsel %vm364, %v363, %v362
        %v366 = vrot.slane %v349, 2
        %vm367 = vcmask 1046534
        %v368 = vsel %vm367, %v366, %v365
        %v369 = vrot.slane %v350, 1
        %vm370 = vcmask 1047559
        %v371 = vsel %vm370, %v369, %v368
        %v372 = vpack.c.b16 %v371, %v371
        %374 = vst [vmem:[#allocation1] ss:$4 sm:$0xff] %v294
        %v375 = vld.sshfl [vmem:[#allocation1] sm:$0xff pattern:$0x73625140]
        %s378 = scalar_lea.vmem [#allocation1], 32
        %379 = vst [vmem:[%s378] ss:$4 sm:$0xff] %v295
        %v380 = vld.sshfl [vmem:[#allocation1 + $0x20] sm:$0xff pattern:$0x73625140]
        %383 = vst [vmem:[#allocation1] ss:$4 sm:$0xff] %v296
        %v384 = vld.sshfl [vmem:[#allocation1] sm:$0xff pattern:$0x73625140]
        %387 = vst [vmem:[%s378] ss:$4 sm:$0xff] %v297
        %v388 = vld.sshfl [vmem:[#allocation1 + $0x20] sm:$0xff pattern:$0x73625140]
        %391 = vst [vmem:[#allocation1] ss:$4 sm:$0xff] %v298
        %v392 = vld.sshfl [vmem:[#allocation1] sm:$0xff pattern:$0x73625140]
        %395 = vst [vmem:[%s378] ss:$4 sm:$0xff] %v299
        %v396 = vld.sshfl [vmem:[#allocation1 + $0x20] sm:$0xff pattern:$0x73625140]
        %399 = vst [vmem:[#allocation1] ss:$4 sm:$0xff] %v300
        %v400 = vld.sshfl [vmem:[#allocation1] sm:$0xff pattern:$0x73625140]
        %403 = vst [vmem:[%s378] ss:$4 sm:$0xff] %v301
        %v404 = vld.sshfl [vmem:[#allocation1 + $0x20] sm:$0xff pattern:$0x73625140]
        %v406 = vunpack.c.l.b16 %v375
        %v407 = vunpack.c.l.b16 %v380
        %v408 = vunpack.c.l.b16 %v384
        %v409 = vunpack.c.l.b16 %v388
        %v410 = vunpack.c.l.b16 %v392
        %v411 = vunpack.c.l.b16 %v396
        %v412 = vunpack.c.l.b16 %v400
        %v413 = vunpack.c.l.b16 %v404
        %v414 = vrot.slane %v407, 7
        %v415 = vsel %vm352, %v414, %v406
        %v416 = vrot.slane %v408, 6
        %v417 = vsel %vm355, %v416, %v415
        %v418 = vrot.slane %v409, 5
        %v419 = vsel %vm358, %v418, %v417
        %v420 = vrot.slane %v410, 4
        %v421 = vsel %vm361, %v420, %v419
        %v422 = vrot.slane %v411, 3
        %v423 = vsel %vm364, %v422, %v421
        %v424 = vrot.slane %v412, 2
        %v425 = vsel %vm367, %v424, %v423
        %v426 = vrot.slane %v413, 1
        %v427 = vsel %vm370, %v426, %v425
        %v428 = vpack.c.b16 %v427, %v427
        %vm429 = vcmask 130048
        %v431 = vsel %vm429, %v372, 0
        %v434 = vsel %vm429, %v428, 0
        %436 = vmatpush.bf16.xpose.msra.mxu0 0
        %437 = vmatpush.bf16.xpose.msra.mxu0 0
        %438 = vmatpush.bf16.xpose.msra.mxu0 0
        %439 = vmatpush.bf16.xpose.msra.mxu0 0
        %440 = vmatpush.bf16.xpose.msra.mxu0 0
        %441 = vmatpush.bf16.xpose.msra.mxu0 0
        %442 = vmatpush.bf16.xpose.msra.mxu0 0
        %443 = vmatpush.bf16.xpose.msra.mxu0 %v434
        %444 = vmatmul.bf16.gmra.mxu0 %v431
        %v445 = vpop.f32.mrf.mxu0
        %v446 = vadd.f32 0.0, %v445
        %v447 = vpop.f32.mrf.mxu0
        %448 = vdwg.mxu0
        %v449 = vmul.f32 %v446, 0.25
        %vm450 = vcmask 64512
        %451 = vst.msk [vmem:[%s257] sm:$0xff] %vm450, %v449
        %v452 = vsel %vm450, %v449, -inf
        %453 = vmax.xlane.f32.xlu0 %v452
        %v454 = vpop.xlane.xlu0 %453
        %v455 = vsub.f32 %v449, %v454
        %v456 = vmul.f32 %v455, 1.442695
        %v457 = vpow.pop %v456
        %v458 = vsel %vm450, %v457, 0.0
        %459 = vadd.xlane.f32.xlu0 %v458
        %v460 = vpop.xlane.xlu0 %459
        %v461 = vrcp.pop %v460
        %v462 = vmul.f32 %v457, %v461
        %v463 = vpack.c.bf16 %v462, %v462
        %465 = vst [vmem:[#allocation1] ss:$4 sm:$0xff] %v302
        %v466 = vld.sshfl [vmem:[#allocation1] sm:$0xff pattern:$0x73625140]
        %s469 = scalar_lea.vmem [#allocation1], 32
        %470 = vst [vmem:[%s469] ss:$4 sm:$0xff] %v303
        %v471 = vld.sshfl [vmem:[#allocation1 + $0x20] sm:$0xff pattern:$0x73625140]
        %474 = vst [vmem:[#allocation1] ss:$4 sm:$0xff] %v304
        %v475 = vld.sshfl [vmem:[#allocation1] sm:$0xff pattern:$0x73625140]
        %478 = vst [vmem:[%s469] ss:$4 sm:$0xff] %v305
        %v479 = vld.sshfl [vmem:[#allocation1 + $0x20] sm:$0xff pattern:$0x73625140]
        %482 = vst [vmem:[#allocation1] ss:$4 sm:$0xff] %v306
        %v483 = vld.sshfl [vmem:[#allocation1] sm:$0xff pattern:$0x73625140]
        %486 = vst [vmem:[%s469] ss:$4 sm:$0xff] %v307
        %v487 = vld.sshfl [vmem:[#allocation1 + $0x20] sm:$0xff pattern:$0x73625140]
        %490 = vst [vmem:[#allocation1] ss:$4 sm:$0xff] %v308
        %v491 = vld.sshfl [vmem:[#allocation1] sm:$0xff pattern:$0x73625140]
        %494 = vst [vmem:[%s469] ss:$4 sm:$0xff] %v309
        %v495 = vld.sshfl [vmem:[#allocation1 + $0x20] sm:$0xff pattern:$0x73625140]
        %v497 = vunpack.c.l.b16 %v466
        %v498 = vunpack.c.l.b16 %v471
        %v499 = vunpack.c.l.b16 %v475
        %v500 = vunpack.c.l.b16 %v479
        %v501 = vunpack.c.l.b16 %v483
        %v502 = vunpack.c.l.b16 %v487
        %v503 = vunpack.c.l.b16 %v491
        %v504 = vunpack.c.l.b16 %v495
        %v505 = vrot.slane %v498, 7
        %v506 = vsel %vm352, %v505, %v497
        %v507 = vrot.slane %v499, 6
        %v508 = vsel %vm355, %v507, %v506
        %v509 = vrot.slane %v500, 5
        %v510 = vsel %vm358, %v509, %v508
        %v511 = vrot.slane %v501, 4
        %v512 = vsel %vm361, %v511, %v510
        %v513 = vrot.slane %v502, 3
        %v514 = vsel %vm364, %v513, %v512
        %v515 = vrot.slane %v503, 2
        %v516 = vsel %vm367, %v515, %v514
        %v517 = vrot.slane %v504, 1
        %v518 = vsel %vm370, %v517, %v516
        %v519 = vpack.c.b16 %v518, %v518
        %v521 = vsel %vm450, %v463, 0
        %vm523 = vcmask 1043456
        %v525 = vsel %vm523, %v519, 0
        %527 = vmatpush.bf16.msra.mxu0 0
        %528 = vmatpush.bf16.msra.mxu0 0
        %529 = vmatpush.bf16.msra.mxu0 0
        %530 = vmatpush.bf16.msra.mxu0 0
        %531 = vmatpush.bf16.msra.mxu0 0
        %532 = vmatpush.bf16.msra.mxu0 0
        %533 = vmatpush.bf16.msra.mxu0 0
        %534 = vmatpush.bf16.msra.mxu0 %v525
        %535 = vmatmul.bf16.gmra.mxu0 %v521
        %v536 = vpop.f32.mrf.mxu0
        %v537 = vadd.f32 0.0, %v536
        %v538 = vpop.f32.mrf.mxu0
        %539 = vdwg.mxu0
        %v540 = vpack.c.bf16 %v537, %v537
        %vm541 = vcmask 125952
        %542 = vst.msk [vmem:[%s284] sm:$0xf] %vm541, %v540
        %543 = vst [vmem:[#allocation1] ss:$4 sm:$0xff] %v286
        %v544 = vld.sshfl [vmem:[#allocation1] sm:$0xff pattern:$0x73625140]
        %s546 = scalar_lea.vmem [#allocation1], 32
        %547 = vst [vmem:[%s546] ss:$4 sm:$0xff] %v287
        %v548 = vld.sshfl [vmem:[#allocation1 + $0x20] sm:$0xff pattern:$0x73625140]
        %550 = vst [vmem:[#allocation1] ss:$4 sm:$0xff] %v288
        %v551 = vld.sshfl [vmem:[#allocation1] sm:$0xff pattern:$0x73625140]
        %553 = vst [vmem:[%s546] ss:$4 sm:$0xff] %v289
        %v554 = vld.sshfl [vmem:[#allocation1 + $0x20] sm:$0xff pattern:$0x73625140]
        %556 = vst [vmem:[#allocation1] ss:$4 sm:$0xff] %v290
        %v557 = vld.sshfl [vmem:[#allocation1] sm:$0xff pattern:$0x73625140]
        %559 = vst [vmem:[%s546] ss:$4 sm:$0xff] %v291
        %v560 = vld.sshfl [vmem:[#allocation1 + $0x20] sm:$0xff pattern:$0x73625140]
        %562 = vst [vmem:[#allocation1] ss:$4 sm:$0xff] %v292
        %v563 = vld.sshfl [vmem:[#allocation1] sm:$0xff pattern:$0x73625140]
        %565 = vst [vmem:[%s546] ss:$4 sm:$0xff] %v293
        %v566 = vld.sshfl [vmem:[#allocation1 + $0x20] sm:$0xff pattern:$0x73625140]
        %v568 = vunpack.c.l.b16 %v544
        %v569 = vunpack.c.l.b16 %v548
        %v570 = vunpack.c.l.b16 %v551
        %v571 = vunpack.c.l.b16 %v554
        %v572 = vunpack.c.l.b16 %v557
        %v573 = vunpack.c.l.b16 %v560
        %v574 = vunpack.c.l.b16 %v563
        %v575 = vunpack.c.l.b16 %v566
        %v576 = vrot.slane %v568, 1
        %v577 = vsel %vm352, %v569, %v576
        %v578 = vrot.slane %v570, 7
        %v579 = vsel %vm355, %v578, %v577
        %v580 = vrot.slane %v571, 6
        %v581 = vsel %vm358, %v580, %v579
        %v582 = vrot.slane %v572, 5
        %v583 = vsel %vm361, %v582, %v581
        %v584 = vrot.slane %v573, 4
        %v585 = vsel %vm364, %v584, %v583
        %v586 = vrot.slane %v574, 3
        %v587 = vsel %vm367, %v586, %v585
        %v588 = vrot.slane %v575, 2
        %v589 = vsel %vm370, %v588, %v587
        %v590 = vpack.c.b16 %v589, %v589
        %591 = vst [vmem:[#allocation1] ss:$4 sm:$0xff] %v294
        %v592 = vld.sshfl [vmem:[#allocation1] sm:$0xff pattern:$0x73625140]
        %s594 = scalar_lea.vmem [#allocation1], 32
        %595 = vst [vmem:[%s594] ss:$4 sm:$0xff] %v295
        %v596 = vld.sshfl [vmem:[#allocation1 + $0x20] sm:$0xff pattern:$0x73625140]
        %598 = vst [vmem:[#allocation1] ss:$4 sm:$0xff] %v296
        %v599 = vld.sshfl [vmem:[#allocation1] sm:$0xff pattern:$0x73625140]
        %601 = vst [vmem:[%s594] ss:$4 sm:$0xff] %v297
        %v602 = vld.sshfl [vmem:[#allocation1 + $0x20] sm:$0xff pattern:$0x73625140]
        %604 = vst [vmem:[#allocation1] ss:$4 sm:$0xff] %v298
        %v605 = vld.sshfl [vmem:[#allocation1] sm:$0xff pattern:$0x73625140]
        %607 = vst [vmem:[%s594] ss:$4 sm:$0xff] %v299
        %v608 = vld.sshfl [vmem:[#allocation1 + $0x20] sm:$0xff pattern:$0x73625140]
        %610 = vst [vmem:[#allocation1] ss:$4 sm:$0xff] %v300
        %v611 = vld.sshfl [vmem:[#allocation1] sm:$0xff pattern:$0x73625140]
        %613 = vst [vmem:[%s594] ss:$4 sm:$0xff] %v301
        %v614 = vld.sshfl [vmem:[#allocation1 + $0x20] sm:$0xff pattern:$0x73625140]
        %v616 = vunpack.c.l.b16 %v592
        %v617 = vunpack.c.l.b16 %v596
        %v618 = vunpack.c.l.b16 %v599
        %v619 = vunpack.c.l.b16 %v602
        %v620 = vunpack.c.l.b16 %v605
        %v621 = vunpack.c.l.b16 %v608
        %v622 = vunpack.c.l.b16 %v611
        %v623 = vunpack.c.l.b16 %v614
        %v624 = vrot.slane %v616, 1
        %v625 = vsel %vm352, %v617, %v624
        %v626 = vrot.slane %v618, 7
        %v627 = vsel %vm355, %v626, %v625
        %v628 = vrot.slane %v619, 6
        %v629 = vsel %vm358, %v628, %v627
        %v630 = vrot.slane %v620, 5
        %v631 = vsel %vm361, %v630, %v629
        %v632 = vrot.slane %v621, 4
        %v633 = vsel %vm364, %v632, %v631
        %v634 = vrot.slane %v622, 3
        %v635 = vsel %vm367, %v634, %v633
        %v636 = vrot.slane %v623, 2
        %v637 = vsel %vm370, %v636, %v635
        %v638 = vpack.c.b16 %v637, %v637
        %v640 = vsel %vm429, %v590, 0
        %v643 = vsel %vm429, %v638, 0
        %645 = vmatpush.bf16.xpose.msra.mxu0 0
        %646 = vmatpush.bf16.xpose.msra.mxu0 0
        %647 = vmatpush.bf16.xpose.msra.mxu0 0
        %648 = vmatpush.bf16.xpose.msra.mxu0 0
        %649 = vmatpush.bf16.xpose.msra.mxu0 0
        %650 = vmatpush.bf16.xpose.msra.mxu0 0
        %651 = vmatpush.bf16.xpose.msra.mxu0 0
        %652 = vmatpush.bf16.xpose.msra.mxu0 %v643
        %653 = vmatmul.bf16.gmra.mxu0 %v640
        %v654 = vpop.f32.mrf.mxu0
        %v655 = vadd.f32 0.0, %v654
        %v656 = vpop.f32.mrf.mxu0
        %657 = vdwg.mxu0
        %v658 = vmul.f32 %v655, 0.25
        %s659 = scalar_lea.vmem %s257, 8 [#allocation2]
        %660 = vst.msk [vmem:[%s659] sm:$0xff] %vm450, %v658
        %v661 = vsel %vm450, %v658, -inf
        %662 = vmax.xlane.f32.xlu0 %v661
        %v663 = vpop.xlane.xlu0 %662
        %v664 = vsub.f32 %v658, %v663
        %v665 = vmul.f32 %v664, 1.442695
        %v666 = vpow.pop %v665
        %v667 = vsel %vm450, %v666, 0.0
        %668 = vadd.xlane.f32.xlu0 %v667
        %v669 = vpop.xlane.xlu0 %668
        %v670 = vrcp.pop %v669
        %v671 = vmul.f32 %v666, %v670
        %v672 = vpack.c.bf16 %v671, %v671
        %673 = vst [vmem:[#allocation1] ss:$4 sm:$0xff] %v302
        %v674 = vld.sshfl [vmem:[#allocation1] sm:$0xff pattern:$0x73625140]
        %s676 = scalar_lea.vmem [#allocation1], 32
        %677 = vst [vmem:[%s676] ss:$4 sm:$0xff] %v303
        %v678 = vld.sshfl [vmem:[#allocation1 + $0x20] sm:$0xff pattern:$0x73625140]
        %680 = vst [vmem:[#allocation1] ss:$4 sm:$0xff] %v304
        %v681 = vld.sshfl [vmem:[#allocation1] sm:$0xff pattern:$0x73625140]
        %683 = vst [vmem:[%s676] ss:$4 sm:$0xff] %v305
        %v684 = vld.sshfl [vmem:[#allocation1 + $0x20] sm:$0xff pattern:$0x73625140]
        %686 = vst [vmem:[#allocation1] ss:$4 sm:$0xff] %v306
        %v687 = vld.sshfl [vmem:[#allocation1] sm:$0xff pattern:$0x73625140]
        %689 = vst [vmem:[%s676] ss:$4 sm:$0xff] %v307
        %v690 = vld.sshfl [vmem:[#allocation1 + $0x20] sm:$0xff pattern:$0x73625140]
        %692 = vst [vmem:[#allocation1] ss:$4 sm:$0xff] %v308
        %v693 = vld.sshfl [vmem:[#allocation1] sm:$0xff pattern:$0x73625140]
        %695 = vst [vmem:[%s676] ss:$4 sm:$0xff] %v309
        %v696 = vld.sshfl [vmem:[#allocation1 + $0x20] sm:$0xff pattern:$0x73625140]
        %v698 = vunpack.c.l.b16 %v674
        %v699 = vunpack.c.l.b16 %v678
        %v700 = vunpack.c.l.b16 %v681
        %v701 = vunpack.c.l.b16 %v684
        %v702 = vunpack.c.l.b16 %v687
        %v703 = vunpack.c.l.b16 %v690
        %v704 = vunpack.c.l.b16 %v693
        %v705 = vunpack.c.l.b16 %v696
        %v706 = vrot.slane %v698, 1
        %v707 = vsel %vm352, %v699, %v706
        %v708 = vrot.slane %v700, 7
        %v709 = vsel %vm355, %v708, %v707
        %v710 = vrot.slane %v701, 6
        %v711 = vsel %vm358, %v710, %v709
        %v712 = vrot.slane %v702, 5
        %v713 = vsel %vm361, %v712, %v711
        %v714 = vrot.slane %v703, 4
        %v715 = vsel %vm364, %v714, %v713
        %v716 = vrot.slane %v704, 3
        %v717 = vsel %vm367, %v716, %v715
        %v718 = vrot.slane %v705, 2
        %v719 = vsel %vm370, %v718, %v717
        %v720 = vpack.c.b16 %v719, %v719
        %v722 = vsel %vm450, %v672, 0
        %v725 = vsel %vm523, %v720, 0
        %727 = vmatpush.bf16.msra.mxu0 0
        %728 = vmatpush.bf16.msra.mxu0 0
        %729 = vmatpush.bf16.msra.mxu0 0
        %730 = vmatpush.bf16.msra.mxu0 0
        %731 = vmatpush.bf16.msra.mxu0 0
        %732 = vmatpush.bf16.msra.mxu0 0
        %733 = vmatpush.bf16.msra.mxu0 0
        %734 = vmatpush.bf16.msra.mxu0 %v725
        %735 = vmatmul.bf16.gmra.mxu0 %v722
        %v736 = vpop.f32.mrf.mxu0
        %v737 = vadd.f32 0.0, %v736
        %v738 = vpop.f32.mrf.mxu0
        %739 = vdwg.mxu0
        %v740 = vpack.c.bf16 %v737, %v737
        %742 = vrot.lane.b32.xlu0 %v740, 16
        %v743 = vpop.permute.xlu0 %742
        %vm745 = vcmask 257152
        %746 = vst.msk [vmem:[%s284] sm:$0xf] %vm745, %v743
        %747 = vst [vmem:[#allocation1] ss:$4 sm:$0xff] %v286
        %v748 = vld.sshfl [vmem:[#allocation1] sm:$0xff pattern:$0x73625140]
        %s750 = scalar_lea.vmem [#allocation1], 32
        %751 = vst [vmem:[%s750] ss:$4 sm:$0xff] %v287
        %v752 = vld.sshfl [vmem:[#allocation1 + $0x20] sm:$0xff pattern:$0x73625140]
        %754 = vst [vmem:[#allocation1] ss:$4 sm:$0xff] %v288
        %v755 = vld.sshfl [vmem:[#allocation1] sm:$0xff pattern:$0x73625140]
        %757 = vst [vmem:[%s750] ss:$4 sm:$0xff] %v289
        %v758 = vld.sshfl [vmem:[#allocation1 + $0x20] sm:$0xff pattern:$0x73625140]
        %760 = vst [vmem:[#allocation1] ss:$4 sm:$0xff] %v290
        %v761 = vld.sshfl [vmem:[#allocation1] sm:$0xff pattern:$0x73625140]
        %763 = vst [vmem:[%s750] ss:$4 sm:$0xff] %v291
        %v764 = vld.sshfl [vmem:[#allocation1 + $0x20] sm:$0xff pattern:$0x73625140]
        %766 = vst [vmem:[#allocation1] ss:$4 sm:$0xff] %v292
        %v767 = vld.sshfl [vmem:[#allocation1] sm:$0xff pattern:$0x73625140]
        %769 = vst [vmem:[%s750] ss:$4 sm:$0xff] %v293
        %v770 = vld.sshfl [vmem:[#allocation1 + $0x20] sm:$0xff pattern:$0x73625140]
        %v772 = vunpack.c.l.b16 %v748
        %v773 = vunpack.c.l.b16 %v752
        %v774 = vunpack.c.l.b16 %v755
        %v775 = vunpack.c.l.b16 %v758
        %v776 = vunpack.c.l.b16 %v761
        %v777 = vunpack.c.l.b16 %v764
        %v778 = vunpack.c.l.b16 %v767
        %v779 = vunpack.c.l.b16 %v770
        %v780 = vrot.slane %v772, 2
        %v781 = vrot.slane %v773, 1
        %v782 = vsel %vm352, %v781, %v780
        %v783 = vsel %vm355, %v774, %v782
        %v784 = vrot.slane %v775, 7
        %v785 = vsel %vm358, %v784, %v783
        %v786 = vrot.slane %v776, 6
        %v787 = vsel %vm361, %v786, %v785
        %v788 = vrot.slane %v777, 5
        %v789 = vsel %vm364, %v788, %v787
        %v790 = vrot.slane %v778, 4
        %v791 = vsel %vm367, %v790, %v789
        %v792 = vrot.slane %v779, 3
        %v793 = vsel %vm370, %v792, %v791
        %v794 = vpack.c.b16 %v793, %v793
        %795 = vst [vmem:[#allocation1] ss:$4 sm:$0xff] %v294
        %v796 = vld.sshfl [vmem:[#allocation1] sm:$0xff pattern:$0x73625140]
        %s798 = scalar_lea.vmem [#allocation1], 32
        %799 = vst [vmem:[%s798] ss:$4 sm:$0xff] %v295
        %v800 = vld.sshfl [vmem:[#allocation1 + $0x20] sm:$0xff pattern:$0x73625140]
        %802 = vst [vmem:[#allocation1] ss:$4 sm:$0xff] %v296
        %v803 = vld.sshfl [vmem:[#allocation1] sm:$0xff pattern:$0x73625140]
        %805 = vst [vmem:[%s798] ss:$4 sm:$0xff] %v297
        %v806 = vld.sshfl [vmem:[#allocation1 + $0x20] sm:$0xff pattern:$0x73625140]
        %808 = vst [vmem:[#allocation1] ss:$4 sm:$0xff] %v298
        %v809 = vld.sshfl [vmem:[#allocation1] sm:$0xff pattern:$0x73625140]
        %811 = vst [vmem:[%s798] ss:$4 sm:$0xff] %v299
        %v812 = vld.sshfl [vmem:[#allocation1 + $0x20] sm:$0xff pattern:$0x73625140]
        %814 = vst [vmem:[#allocation1] ss:$4 sm:$0xff] %v300
        %v815 = vld.sshfl [vmem:[#allocation1] sm:$0xff pattern:$0x73625140]
        %817 = vst [vmem:[%s798] ss:$4 sm:$0xff] %v301
        %v818 = vld.sshfl [vmem:[#allocation1 + $0x20] sm:$0xff pattern:$0x73625140]
        %v820 = vunpack.c.l.b16 %v796
        %v821 = vunpack.c.l.b16 %v800
        %v822 = vunpack.c.l.b16 %v803
        %v823 = vunpack.c.l.b16 %v806
        %v824 = vunpack.c.l.b16 %v809
        %v825 = vunpack.c.l.b16 %v812
        %v826 = vunpack.c.l.b16 %v815
        %v827 = vunpack.c.l.b16 %v818
        %v828 = vrot.slane %v820, 2
        %v829 = vrot.slane %v821, 1
        %v830 = vsel %vm352, %v829, %v828
        %v831 = vsel %vm355, %v822, %v830
        %v832 = vrot.slane %v823, 7
        %v833 = vsel %vm358, %v832, %v831
        %v834 = vrot.slane %v824, 6
        %v835 = vsel %vm361, %v834, %v833
        %v836 = vrot.slane %v825, 5
        %v837 = vsel %vm364, %v836, %v835
        %v838 = vrot.slane %v826, 4
        %v839 = vsel %vm367, %v838, %v837
        %v840 = vrot.slane %v827, 3
        %v841 = vsel %vm370, %v840, %v839
        %v842 = vpack.c.b16 %v841, %v841
        %v844 = vsel %vm429, %v794, 0
        %v847 = vsel %vm429, %v842, 0
        %849 = vmatpush.bf16.xpose.msra.mxu0 0
        %850 = vmatpush.bf16.xpose.msra.mxu0 0
        %851 = vmatpush.bf16.xpose.msra.mxu0 0
        %852 = vmatpush.bf16.xpose.msra.mxu0 0
        %853 = vmatpush.bf16.xpose.msra.mxu0 0
        %854 = vmatpush.bf16.xpose.msra.mxu0 0
        %855 = vmatpush.bf16.xpose.msra.mxu0 0
        %856 = vmatpush.bf16.xpose.msra.mxu0 %v847
        %857 = vmatmul.bf16.gmra.mxu0 %v844
        %v858 = vpop.f32.mrf.mxu0
        %v859 = vadd.f32 0.0, %v858
        %v860 = vpop.f32.mrf.mxu0
        %861 = vdwg.mxu0
        %v862 = vmul.f32 %v859, 0.25
        %s863 = scalar_lea.vmem %s257, 16 [#allocation2]
        %864 = vst.msk [vmem:[%s863] sm:$0xff] %vm450, %v862
        %v865 = vsel %vm450, %v862, -inf
        %866 = vmax.xlane.f32.xlu0 %v865
        %v867 = vpop.xlane.xlu0 %866
        %v868 = vsub.f32 %v862, %v867
        %v869 = vmul.f32 %v868, 1.442695
        %v870 = vpow.pop %v869
        %v871 = vsel %vm450, %v870, 0.0
        %872 = vadd.xlane.f32.xlu0 %v871
        %v873 = vpop.xlane.xlu0 %872
        %v874 = vrcp.pop %v873
        %v875 = vmul.f32 %v870, %v874
        %v876 = vpack.c.bf16 %v875, %v875
        %877 = vst [vmem:[#allocation1] ss:$4 sm:$0xff] %v302
        %v878 = vld.sshfl [vmem:[#allocation1] sm:$0xff pattern:$0x73625140]
        %s880 = scalar_lea.vmem [#allocation1], 32
        %881 = vst [vmem:[%s880] ss:$4 sm:$0xff] %v303
        %v882 = vld.sshfl [vmem:[#allocation1 + $0x20] sm:$0xff pattern:$0x73625140]
        %884 = vst [vmem:[#allocation1] ss:$4 sm:$0xff] %v304
        %v885 = vld.sshfl [vmem:[#allocation1] sm:$0xff pattern:$0x73625140]
        %887 = vst [vmem:[%s880] ss:$4 sm:$0xff] %v305
        %v888 = vld.sshfl [vmem:[#allocation1 + $0x20] sm:$0xff pattern:$0x73625140]
        %890 = vst [vmem:[#allocation1] ss:$4 sm:$0xff] %v306
        %v891 = vld.sshfl [vmem:[#allocation1] sm:$0xff pattern:$0x73625140]
        %893 = vst [vmem:[%s880] ss:$4 sm:$0xff] %v307
        %v894 = vld.sshfl [vmem:[#allocation1 + $0x20] sm:$0xff pattern:$0x73625140]
        %896 = vst [vmem:[#allocation1] ss:$4 sm:$0xff] %v308
        %v897 = vld.sshfl [vmem:[#allocation1] sm:$0xff pattern:$0x73625140]
        %899 = vst [vmem:[%s880] ss:$4 sm:$0xff] %v309
        %v900 = vld.sshfl [vmem:[#allocation1 + $0x20] sm:$0xff pattern:$0x73625140]
        %v902 = vunpack.c.l.b16 %v878
        %v903 = vunpack.c.l.b16 %v882
        %v904 = vunpack.c.l.b16 %v885
        %v905 = vunpack.c.l.b16 %v888
        %v906 = vunpack.c.l.b16 %v891
        %v907 = vunpack.c.l.b16 %v894
        %v908 = vunpack.c.l.b16 %v897
        %v909 = vunpack.c.l.b16 %v900
        %v910 = vrot.slane %v902, 2
        %v911 = vrot.slane %v903, 1
        %v912 = vsel %vm352, %v911, %v910
        %v913 = vsel %vm355, %v904, %v912
        %v914 = vrot.slane %v905, 7
        %v915 = vsel %vm358, %v914, %v913
        %v916 = vrot.slane %v906, 6
        %v917 = vsel %vm361, %v916, %v915
        %v918 = vrot.slane %v907, 5
        %v919 = vsel %vm364, %v918, %v917
        %v920 = vrot.slane %v908, 4
        %v921 = vsel %vm367, %v920, %v919
        %v922 = vrot.slane %v909, 3
        %v923 = vsel %vm370, %v922, %v921
        %v924 = vpack.c.b16 %v923, %v923
        %v926 = vsel %vm450, %v876, 0
        %v929 = vsel %vm523, %v924, 0
        %931 = vmatpush.bf16.msra.mxu0 0
        %932 = vmatpush.bf16.msra.mxu0 0
        %933 = vmatpush.bf16.msra.mxu0 0
        %934 = vmatpush.bf16.msra.mxu0 0
        %935 = vmatpush.bf16.msra.mxu0 0
        %936 = vmatpush.bf16.msra.mxu0 0
        %937 = vmatpush.bf16.msra.mxu0 0
        %938 = vmatpush.bf16.msra.mxu0 %v929
        %939 = vmatmul.bf16.gmra.mxu0 %v926
        %v940 = vpop.f32.mrf.mxu0
        %v941 = vadd.f32 0.0, %v940
        %v942 = vpop.f32.mrf.mxu0
        %943 = vdwg.mxu0
        %v944 = vpack.c.bf16 %v941, %v941
        %946 = vrot.lane.b32.xlu0 %v944, 32
        %v947 = vpop.permute.xlu0 %946
        %vm949 = vcmask 388352
        %950 = vst.msk [vmem:[%s284] sm:$0xf] %vm949, %v947
        %951 = vst [vmem:[#allocation1] ss:$4 sm:$0xff] %v286
        %v952 = vld.sshfl [vmem:[#allocation1] sm:$0xff pattern:$0x73625140]
        %s954 = scalar_lea.vmem [#allocation1], 32
        %955 = vst [vmem:[%s954] ss:$4 sm:$0xff] %v287
        %v956 = vld.sshfl [vmem:[#allocation1 + $0x20] sm:$0xff pattern:$0x73625140]
        %958 = vst [vmem:[#allocation1] ss:$4 sm:$0xff] %v288
        %v959 = vld.sshfl [vmem:[#allocation1] sm:$0xff pattern:$0x73625140]
        %961 = vst [vmem:[%s954] ss:$4 sm:$0xff] %v289
        %v962 = vld.sshfl [vmem:[#allocation1 + $0x20] sm:$0xff pattern:$0x73625140]
        %964 = vst [vmem:[#allocation1] ss:$4 sm:$0xff] %v290
        %v965 = vld.sshfl [vmem:[#allocation1] sm:$0xff pattern:$0x73625140]
        %967 = vst [vmem:[%s954] ss:$4 sm:$0xff] %v291
        %v968 = vld.sshfl [vmem:[#allocation1 + $0x20] sm:$0xff pattern:$0x73625140]
        %970 = vst [vmem:[#allocation1] ss:$4 sm:$0xff] %v292
        %v971 = vld.sshfl [vmem:[#allocation1] sm:$0xff pattern:$0x73625140]
        %973 = vst [vmem:[%s954] ss:$4 sm:$0xff] %v293
        %v974 = vld.sshfl [vmem:[#allocation1 + $0x20] sm:$0xff pattern:$0x73625140]
        %v976 = vunpack.c.l.b16 %v952
        %v977 = vunpack.c.l.b16 %v956
        %v978 = vunpack.c.l.b16 %v959
        %v979 = vunpack.c.l.b16 %v962
        %v980 = vunpack.c.l.b16 %v965
        %v981 = vunpack.c.l.b16 %v968
        %v982 = vunpack.c.l.b16 %v971
        %v983 = vunpack.c.l.b16 %v974
        %v984 = vrot.slane %v976, 3
        %v985 = vrot.slane %v977, 2
        %v986 = vsel %vm352, %v985, %v984
        %v987 = vrot.slane %v978, 1
        %v988 = vsel %vm355, %v987, %v986
        %v989 = vsel %vm358, %v979, %v988
        %v990 = vrot.slane %v980, 7
        %v991 = vsel %vm361, %v990, %v989
        %v992 = vrot.slane %v981, 6
        %v993 = vsel %vm364, %v992, %v991
        %v994 = vrot.slane %v982, 5
        %v995 = vsel %vm367, %v994, %v993
        %v996 = vrot.slane %v983, 4
        %v997 = vsel %vm370, %v996, %v995
        %v998 = vpack.c.b16 %v997, %v997
        %999 = vst [vmem:[#allocation1] ss:$4 sm:$0xff] %v294
        %v1000 = vld.sshfl [vmem:[#allocation1] sm:$0xff pattern:$0x73625140]
        %s1002 = scalar_lea.vmem [#allocation1], 32
        %1003 = vst [vmem:[%s1002] ss:$4 sm:$0xff] %v295
        %v1004 = vld.sshfl [vmem:[#allocation1 + $0x20] sm:$0xff pattern:$0x73625140]
        %1006 = vst [vmem:[#allocation1] ss:$4 sm:$0xff] %v296
        %v1007 = vld.sshfl [vmem:[#allocation1] sm:$0xff pattern:$0x73625140]
        %1009 = vst [vmem:[%s1002] ss:$4 sm:$0xff] %v297
        %v1010 = vld.sshfl [vmem:[#allocation1 + $0x20] sm:$0xff pattern:$0x73625140]
        %1012 = vst [vmem:[#allocation1] ss:$4 sm:$0xff] %v298
        %v1013 = vld.sshfl [vmem:[#allocation1] sm:$0xff pattern:$0x73625140]
        %1015 = vst [vmem:[%s1002] ss:$4 sm:$0xff] %v299
        %v1016 = vld.sshfl [vmem:[#allocation1 + $0x20] sm:$0xff pattern:$0x73625140]
        %1018 = vst [vmem:[#allocation1] ss:$4 sm:$0xff] %v300
        %v1019 = vld.sshfl [vmem:[#allocation1] sm:$0xff pattern:$0x73625140]
        %1021 = vst [vmem:[%s1002] ss:$4 sm:$0xff] %v301
        %v1022 = vld.sshfl [vmem:[#allocation1 + $0x20] sm:$0xff pattern:$0x73625140]
        %v1024 = vunpack.c.l.b16 %v1000
        %v1025 = vunpack.c.l.b16 %v1004
        %v1026 = vunpack.c.l.b16 %v1007
        %v1027 = vunpack.c.l.b16 %v1010
        %v1028 = vunpack.c.l.b16 %v1013
        %v1029 = vunpack.c.l.b16 %v1016
        %v1030 = vunpack.c.l.b16 %v1019
        %v1031 = vunpack.c.l.b16 %v1022
        %v1032 = vrot.slane %v1024, 3
        %v1033 = vrot.slane %v1025, 2
        %v1034 = vsel %vm352, %v1033, %v1032
        %v1035 = vrot.slane %v1026, 1
        %v1036 = vsel %vm355, %v1035, %v1034
        %v1037 = vsel %vm358, %v1027, %v1036
        %v1038 = vrot.slane %v1028, 7
        %v1039 = vsel %vm361, %v1038, %v1037
        %v1040 = vrot.slane %v1029, 6
        %v1041 = vsel %vm364, %v1040, %v1039
        %v1042 = vrot.slane %v1030, 5
        %v1043 = vsel %vm367, %v1042, %v1041
        %v1044 = vrot.slane %v1031, 4
        %v1045 = vsel %vm370, %v1044, %v1043
        %v1046 = vpack.c.b16 %v1045, %v1045
        %v1048 = vsel %vm429, %v998, 0
        %v1051 = vsel %vm429, %v1046, 0
        %1053 = vmatpush.bf16.xpose.msra.mxu0 0
        %1054 = vmatpush.bf16.xpose.msra.mxu0 0
        %1055 = vmatpush.bf16.xpose.msra.mxu0 0
        %1056 = vmatpush.bf16.xpose.msra.mxu0 0
        %1057 = vmatpush.bf16.xpose.msra.mxu0 0
        %1058 = vmatpush.bf16.xpose.msra.mxu0 0
        %1059 = vmatpush.bf16.xpose.msra.mxu0 0
        %1060 = vmatpush.bf16.xpose.msra.mxu0 %v1051
        %1061 = vmatmul.bf16.gmra.mxu0 %v1048
        %v1062 = vpop.f32.mrf.mxu0
        %v1063 = vadd.f32 0.0, %v1062
        %v1064 = vpop.f32.mrf.mxu0
        %1065 = vdwg.mxu0
        %v1066 = vmul.f32 %v1063, 0.25
        %s1067 = scalar_lea.vmem %s257, 24 [#allocation2]
        %1068 = vst.msk [vmem:[%s1067] sm:$0xff] %vm450, %v1066
        %v1069 = vsel %vm450, %v1066, -inf
        %1070 = vmax.xlane.f32.xlu0 %v1069
        %v1071 = vpop.xlane.xlu0 %1070
        %v1072 = vsub.f32 %v1066, %v1071
        %v1073 = vmul.f32 %v1072, 1.442695
        %v1074 = vpow.pop %v1073
        %v1075 = vsel %vm450, %v1074, 0.0
        %1076 = vadd.xlane.f32.xlu0 %v1075
        %v1077 = vpop.xlane.xlu0 %1076
        %v1078 = vrcp.pop %v1077
        %v1079 = vmul.f32 %v1074, %v1078
        %v1080 = vpack.c.bf16 %v1079, %v1079
        %1081 = vst [vmem:[#allocation1] ss:$4 sm:$0xff] %v302
        %v1082 = vld.sshfl [vmem:[#allocation1] sm:$0xff pattern:$0x73625140]
        %s1084 = scalar_lea.vmem [#allocation1], 32
        %1085 = vst [vmem:[%s1084] ss:$4 sm:$0xff] %v303
        %v1086 = vld.sshfl [vmem:[#allocation1 + $0x20] sm:$0xff pattern:$0x73625140]
        %1088 = vst [vmem:[#allocation1] ss:$4 sm:$0xff] %v304
        %v1089 = vld.sshfl [vmem:[#allocation1] sm:$0xff pattern:$0x73625140]
        %1091 = vst [vmem:[%s1084] ss:$4 sm:$0xff] %v305
        %v1092 = vld.sshfl [vmem:[#allocation1 + $0x20] sm:$0xff pattern:$0x73625140]
        %1094 = vst [vmem:[#allocation1] ss:$4 sm:$0xff] %v306
        %v1095 = vld.sshfl [vmem:[#allocation1] sm:$0xff pattern:$0x73625140]
        %1097 = vst [vmem:[%s1084] ss:$4 sm:$0xff] %v307
        %v1098 = vld.sshfl [vmem:[#allocation1 + $0x20] sm:$0xff pattern:$0x73625140]
        %1100 = vst [vmem:[#allocation1] ss:$4 sm:$0xff] %v308
        %v1101 = vld.sshfl [vmem:[#allocation1] sm:$0xff pattern:$0x73625140]
        %1103 = vst [vmem:[%s1084] ss:$4 sm:$0xff] %v309
        %v1104 = vld.sshfl [vmem:[#allocation1 + $0x20] sm:$0xff pattern:$0x73625140]
        %v1106 = vunpack.c.l.b16 %v1082
        %v1107 = vunpack.c.l.b16 %v1086
        %v1108 = vunpack.c.l.b16 %v1089
        %v1109 = vunpack.c.l.b16 %v1092
        %v1110 = vunpack.c.l.b16 %v1095
        %v1111 = vunpack.c.l.b16 %v1098
        %v1112 = vunpack.c.l.b16 %v1101
        %v1113 = vunpack.c.l.b16 %v1104
        %v1114 = vrot.slane %v1106, 3
        %v1115 = vrot.slane %v1107, 2
        %v1116 = vsel %vm352, %v1115, %v1114
        %v1117 = vrot.slane %v1108, 1
        %v1118 = vsel %vm355, %v1117, %v1116
        %v1119 = vsel %vm358, %v1109, %v1118
        %v1120 = vrot.slane %v1110, 7
        %v1121 = vsel %vm361, %v1120, %v1119
        %v1122 = vrot.slane %v1111, 6
        %v1123 = vsel %vm364, %v1122, %v1121
        %v1124 = vrot.slane %v1112, 5
        %v1125 = vsel %vm367, %v1124, %v1123
        %v1126 = vrot.slane %v1113, 4
        %v1127 = vsel %vm370, %v1126, %v1125
        %v1128 = vpack.c.b16 %v1127, %v1127
        %v1130 = vsel %vm450, %v1080, 0
        %v1133 = vsel %vm523, %v1128, 0
        %1135 = vmatpush.bf16.msra.mxu0 0
        %1136 = vmatpush.bf16.msra.mxu0 0
        %1137 = vmatpush.bf16.msra.mxu0 0
        %1138 = vmatpush.bf16.msra.mxu0 0
        %1139 = vmatpush.bf16.msra.mxu0 0
        %1140 = vmatpush.bf16.msra.mxu0 0
        %1141 = vmatpush.bf16.msra.mxu0 0
        %1142 = vmatpush.bf16.msra.mxu0 %v1133
        %1143 = vmatmul.bf16.gmra.mxu0 %v1130
        %v1144 = vpop.f32.mrf.mxu0
        %v1145 = vadd.f32 0.0, %v1144
        %v1146 = vpop.f32.mrf.mxu0
        %1147 = vdwg.mxu0
        %v1148 = vpack.c.bf16 %v1145, %v1145
        %1150 = vrot.lane.b32.xlu0 %v1148, 48
        %v1151 = vpop.permute.xlu0 %1150
        %vm1153 = vcmask 519552
        %1154 = vst.msk [vmem:[%s284] sm:$0xf] %vm1153, %v1151
        %p1155 = scmp.lt.s32.totalorder %s23, 1
        %s1156 = scalar_select %p1155, %s23, 1
        %p1157 = scmp.lt.s32.totalorder %s24, 0
        %s1158 = scalar_select %p1157, %s24, 0
        %s1159 = sadd.s32 %s1158, %s1156
        %s1160 = smul.addr %s1159, 4
        %s1161 = scalar_lea.vmem %s3, %s1160
        %s1162 = sand.u32 %s149, 1
        %s1163 = scalar_lea.sflag [#allocation3], %s1162
        %s1164 = sand.u32 %s149, 1
        %s1165 = smul.addr %s1164, 32
        %s1166 = scalar_lea.vmem [#allocation2], %s1165
        // Predicated region
        $region33: #{_lambda_.8} parent=31 // pred_check
          %p1167 = pneg %p131
        $region34: #{_lambda_.8} parent=31 // pred_check_branch
          %1169 = sbr.rel (%p1167) target = $region36
        $region35: #{_lambda_.8} parent=31 // pred_region
          _
        $region36: #{_lambda_.8} parent=31 // pred_fallthru
          _
        // Predicated region
        $region37: #{_lambda_.8} parent=31 // pred_check
          %p1170 = pneg %p159
        $region38: #{_lambda_.8} parent=31 // pred_check_branch
          %1172 = sbr.rel (%p1170) target = $region40
        $region39: #{_lambda_.8} parent=31 // pred_region
          %1174 = vsyncadd %s1163, 0
          %s1175 = smul.addr %s23, 4
          %s1176 = sadd.s32 %s24, %s1175
          %s1177 = smul.addr %s1176, 8
          %s1178 = scalar_lea.hbm %s4, %s1177
          %s1179 = sshll.u32 %s1166, 4
          %s1180 = int_to_ptr.vmem [resolvable:$true] %s1179
          %s1181 = sshll.u32 %s1178, 4
          %s1182 = int_to_ptr.hbm [resolvable:$true] %s1181
          %1187 = dma.vmem_to_hbm [thread:$0]  %s1180, 512, %s1182, %s1163, 128, 128, 8
        $region40: #{_lambda_.8} parent=31 // pred_fallthru
          _
      $region32: #{_lambda_.8} parent=5 // pred_fallthru
        _
      %p1188 = scmp.le.s32.totalorder 2, %s14
      // Predicated region
      $region41: #{_lambda_.8} parent=5 // pred_check
        %p1189 = pneg %p1188
      $region42: #{_lambda_.8} parent=5 // pred_check_branch
        %1191 = sbr.rel (%p1189) target = $region44
      $region43: #{_lambda_.8} parent=5 // pred_region
        %s1192 = ssub.s32 %s14, 2
        // Predicated region
        $region45: #{_lambda_.8} parent=43 // pred_check
          %p1193 = pneg %p137
        $region46: #{_lambda_.8} parent=43 // pred_check_branch
          %1195 = sbr.rel (%p1193) target = $region48
        $region47: #{_lambda_.8} parent=43 // pred_region
          %p1196 = scmp.lt.s32.totalorder %s25, 1
          %s1197 = scalar_select %p1196, %s25, 1
          %p1198 = scmp.lt.s32.totalorder %s26, 0
          %s1199 = scalar_select %p1198, %s26, 0
          %s1200 = sadd.s32 %s1199, %s1197
          %s1201 = smul.addr %s1200, 4
          %s1202 = scalar_lea.vmem %s3, %s1201
        $region48: #{_lambda_.8} parent=43 // pred_fallthru
          _
        // Predicated region
        $region49: #{_lambda_.8} parent=43 // pred_check
          %p1203 = pneg %p165
        $region50: #{_lambda_.8} parent=43 // pred_check_branch
          %1205 = sbr.rel (%p1203) target = $region52
        $region51: #{_lambda_.8} parent=43 // pred_region
          %s1206 = sand.u32 %s150, 1
          %s1207 = scalar_lea.sflag [#allocation3], %s1206
          %s1208 = sand.u32 %s150, 1
          %s1209 = smul.addr %s1208, 32
          %s1210 = scalar_lea.vmem [#allocation2], %s1209
          %1212 = dma.done %s1207, 512
        $region52: #{_lambda_.8} parent=43 // pred_fallthru
          _
      $region44: #{_lambda_.8} parent=5 // pred_fallthru
        _
    $region6: #{_lambda_.8} parent=1 // loop_footer
      %s18 = sadd.s32 1, %s14
    $region7: #{_lambda_.8} parent=1 // loop_footer_branch
      %13 = sbr.rel target = $region3
    $region8: #{_lambda_.8} parent=1 // loop_exit
      _
    %1213 = vsyncpa [#allocation3], 1
    %s1214 = scalar_lea.sflag [#allocation3], 1
    %1215 = vsyncpa %s1214, 1

</llo_original>
